<compile_context>
chip_gen: v7x
topology: tpu7x:2x2x1
jax: 0.10.0
libtpu: 0.0.40
codegen_flags: <defaults>
</compile_context>

<pallas_src>
import functools

import jax
import jax.numpy as jnp
from jax.experimental import pallas as pl
from jax.experimental.pallas import tpu as pltpu


# ~2-4 MiB lane-dense slabs already sit at ~85% of HBM roofline; bigger tiles only
# reduce pipeline depth (and hurt megacore overlap on v7x).
_TARGET_TILE_BYTES = 3 * 1024 * 1024


def _vmem_cap_bytes():
    """Generation-aware VMEM cap (~75% of physical per-TensorCore VMEM)."""
    try:
        phys = int(pltpu.get_tpu_info().vmem_capacity_bytes)
    except Exception:
        phys = 64 * 1024 * 1024  # conservative: v7x per-TC VMEM
    return (phys * 3) // 4


def _choose_bt(B, per_b_bytes):
    """Batch tile: ~_TARGET_TILE_BYTES per step, >= min(B, 8) grid steps, divides B."""
    bt = max(1, min(B, _TARGET_TILE_BYTES // max(per_b_bytes, 1)))
    depth = min(B, 8)
    bt = min(bt, max(1, B // depth))
    while B % bt:  # largest divisor of B not exceeding bt -> no ragged tail, no padding
        bt -= 1
    return int(bt)


# ----------------------------------------------------------------------------
# Single-pass fused kernel: squeeze + excitation MLP + scale in one HBM pass.
# ----------------------------------------------------------------------------
def _se_fused_kernel(x_ref, w1_ref, w2_ref, o_ref, *, inv_hw):
    xv = x_ref[...]                                                # (bt, C, HW) input dtype
    # Squeeze: global spatial mean with f32 accumulation.
    pooled = jnp.sum(xv, axis=-1, dtype=jnp.float32) * inv_hw      # (bt, C) f32
    # Excitation: Linear -> ReLU -> Linear -> Sigmoid (tiny; f32 on the MXU).
    hid = jnp.maximum(
        jnp.dot(pooled, w1_ref[...], preferred_element_type=jnp.float32,
                precision=jax.lax.Precision.HIGHEST), 0.0)         # (bt, Cr)
    sc = jax.nn.sigmoid(
        jnp.dot(hid, w2_ref[...], preferred_element_type=jnp.float32,
                precision=jax.lax.Precision.HIGHEST))              # (bt, C)
    # Scale: broadcast multiply in the input dtype (no full-tile f32 copy).
    o_ref[...] = (xv * sc[:, :, None].astype(xv.dtype)).astype(o_ref.dtype)


def _se_single_pass(x_flat, w1_t, w2_t, *, B, C, Cr, HW, itemsize, weight_bytes, cap):
    per_b = C * HW * itemsize
    bt = _choose_bt(B, per_b)
    n_steps = B // bt
    tile_bytes = bt * per_b

    # Shallow grids: a 3rd input buffer hides the squeeze->MLP bubble.
    use_buf3 = 3 <= n_steps <= 8
    x_spec = pl.BlockSpec((bt, C, HW), lambda b: (b, 0, 0))
    if use_buf3:
        try:
            x_spec = pl.BlockSpec((bt, C, HW), lambda b: (b, 0, 0),
                                  pipeline_mode=pl.Buffered(3))
        except TypeError:   # older BlockSpec signature without pipeline_mode
            use_buf3 = False
    in_bufs = 3 if use_buf3 else 2

    vmem_limit = int(min(cap, max(16 << 20,
                                  (in_bufs + 2) * tile_bytes
                                  + 2 * weight_bytes + (2 << 20))))

    cost = pl.CostEstimate(
        flops=int(2 * B * C * HW + 4 * B * C * Cr),
        transcendentals=int(B * C),
        bytes_accessed=int(2 * B * C * HW * itemsize + weight_bytes),
    )

    kernel = functools.partial(_se_fused_kernel, inv_hw=float(1.0 / HW))
    return pl.pallas_call(
        kernel,
        out_shape=jax.ShapeDtypeStruct((B, C, HW), x_flat.dtype),
        grid_spec=pltpu.PrefetchScalarGridSpec(
            num_scalar_prefetch=0,
            grid=(n_steps,),
            in_specs=[
                x_spec,
                pl.BlockSpec((C, Cr), lambda b: (0, 0)),
                pl.BlockSpec((Cr, C), lambda b: (0, 0)),
            ],
            out_specs=pl.BlockSpec((bt, C, HW), lambda b: (b, 0, 0)),
        ),
        compiler_params=pltpu.CompilerParams(
            dimension_semantics=("parallel",),
            vmem_limit_bytes=vmem_limit),
        cost_estimate=cost,
    )(x_flat, w1_t, w2_t)


# ----------------------------------------------------------------------------
# Two-pass fallback for images too large for a single (1, C, HW) VMEM slab.
# Pass 1: tiled (masked) mean over HW + excitation MLP -> per-(b, c) scale.
# Pass 2: tiled broadcast multiply.
# ----------------------------------------------------------------------------
def _se_mean_mlp_kernel(x_ref, w1_ref, w2_ref, s_ref, acc_ref, *, inv_hw, hw, hwt):
    h = pl.program_id(1)

    @pl.when(h == 0)
    def _():
        acc_ref[...] = jnp.zeros_like(acc_ref)

    xv = x_ref[...]                                                # (1, C, hwt)
    # Mask the lanes of the last (possibly partial) HW tile.
    lane = jax.lax.broadcasted_iota(jnp.int32, xv.shape, 2)
    valid = hw - h * hwt
    xm = jnp.where(lane < valid, xv, jnp.zeros_like(xv))
    acc_ref[...] += jnp.sum(xm, axis=-1, dtype=jnp.float32)        # (1, C)

    @pl.when(h == pl.num_programs(1) - 1)
    def _():
        pooled = acc_ref[...] * inv_hw                             # (1, C) f32
        hid = jnp.maximum(
            jnp.dot(pooled, w1_ref[...], preferred_element_type=jnp.float32,
                    precision=jax.lax.Precision.HIGHEST), 0.0)
        sc = jax.nn.sigmoid(
            jnp.dot(hid, w2_ref[...], preferred_element_type=jnp.float32,
                    precision=jax.lax.Precision.HIGHEST))          # (1, C)
        s_ref[...] = sc[:, None, :]                                # (1, 1, C)


def _se_scale_kernel(x_ref, s_ref, o_ref):
    xv = x_ref[...]                                                # (1, C, hwt)
    o_ref[...] = (xv * s_ref[...].astype(xv.dtype)).astype(o_ref.dtype)


def _se_two_pass(x_flat, w1_t, w2_t, *, B, C, Cr, HW, itemsize, weight_bytes, cap,
                 hw_tile=None):
    if hw_tile is not None:
        hwt = max(128, (int(hw_tile) // 128) * 128)
    else:
        hwt = max(128, (_TARGET_TILE_BYTES // max(C * itemsize, 1)) // 128 * 128)
    if hwt >= HW:
        hwt = HW
    n_hw = pl.cdiv(HW, hwt)
    tile_bytes = C * hwt * itemsize

    # Pass 1: per-(b, c) sigmoid scale.
    vmem1 = int(min(cap, max(16 << 20, 2 * tile_bytes + 2 * weight_bytes + (2 << 20))))
    mean_kernel = functools.partial(_se_mean_mlp_kernel,
                                    inv_hw=float(1.0 / HW), hw=HW, hwt=hwt)
    scale = pl.pallas_call(
        mean_kernel,
        out_shape=jax.ShapeDtypeStruct((B, 1, C), jnp.float32),
        grid_spec=pltpu.PrefetchScalarGridSpec(
            num_scalar_prefetch=0,
            grid=(B, n_hw),
            in_specs=[
                pl.BlockSpec((1, C, hwt), lambda b, h: (b, 0, h)),
                pl.BlockSpec((C, Cr), lambda b, h: (0, 0)),
                pl.BlockSpec((Cr, C), lambda b, h: (0, 0)),
            ],
            out_specs=pl.BlockSpec((1, 1, C), lambda b, h: (b, 0, 0)),
            scratch_shapes=[pltpu.VMEM((1, C), jnp.float32)],
        ),
        compiler_params=pltpu.CompilerParams(
            dimension_semantics=("parallel", "arbitrary"),
            vmem_limit_bytes=vmem1),
        cost_estimate=pl.CostEstimate(
            flops=int(B * C * HW + 4 * B * C * Cr),
            transcendentals=int(B * C),
            bytes_accessed=int(B * C * HW * itemsize + weight_bytes)),
    )(x_flat, w1_t, w2_t)

    # Pass 2: tiled broadcast multiply; scale reshaped to (B, C, 1) so it
    # broadcasts over HW inside the kernel (tiny B*C tensor, negligible cost).
    scale_bc1 = scale.reshape(B, C, 1)
    vmem2 = int(min(cap, max(16 << 20, 4 * tile_bytes + (2 << 20))))
    return pl.pallas_call(
        _se_scale_kernel,
        out_shape=jax.ShapeDtypeStruct((B, C, HW), x_flat.dtype),
        grid_spec=pltpu.PrefetchScalarGridSpec(
            num_scalar_prefetch=0,
            grid=(B, n_hw),
            in_specs=[
                pl.BlockSpec((1, C, hwt), lambda b, h: (b, 0, h)),
                pl.BlockSpec((1, C, 1), lambda b, h: (b, 0, 0)),
            ],
            out_specs=pl.BlockSpec((1, C, hwt), lambda b, h: (b, 0, h)),
        ),
        compiler_params=pltpu.CompilerParams(
            dimension_semantics=("parallel", "parallel"),
            vmem_limit_bytes=vmem2),
        cost_estimate=pl.CostEstimate(
            flops=int(B * C * HW),
            transcendentals=0,
            bytes_accessed=int(2 * B * C * HW * itemsize)),
    )(x_flat, scale_bc1)


# ----------------------------------------------------------------------------
# Public wrapper.
# ----------------------------------------------------------------------------
def se_forward(x, w1, w2, *, force_two_pass=False, two_pass_hw_tile=None):
    """SELayer forward. x: (B, C, H, W). w1: (C//r, C), w2: (C, C//r) (PyTorch Linear layout)."""
    B, C, H, W = x.shape
    Cr = w1.shape[0]
    HW = H * W
    itemsize = x.dtype.itemsize

    # Lane-dense layout without any padding: merge spatial dims only (free reshape).
    x_flat = x.reshape(B, C, HW)
    # Pre-transpose Linear weights so the kernel does plain row-major dots.
    w1_t = jnp.asarray(w1, jnp.float32).T     # (C, Cr)
    w2_t = jnp.asarray(w2, jnp.float32).T     # (Cr, C)
    weight_bytes = 2 * C * Cr * 4

    cap = _vmem_cap_bytes()
    per_b = C * HW * itemsize
    # Single-pass needs up to (3 in + 2 out) buffers of >= one image slab in VMEM.
    single_pass_fits = (5 * per_b + 2 * weight_bytes + (2 << 20)) <= cap

    if single_pass_fits and not force_two_pass:
        out_flat = _se_single_pass(x_flat, w1_t, w2_t, B=B, C=C, Cr=Cr, HW=HW,
                                   itemsize=itemsize, weight_bytes=weight_bytes,
                                   cap=cap)
    else:
        out_flat = _se_two_pass(x_flat, w1_t, w2_t, B=B, C=C, Cr=Cr, HW=HW,
                                itemsize=itemsize, weight_bytes=weight_bytes,
                                cap=cap, hw_tile=two_pass_hw_tile)
    return out_flat.reshape(B, C, H, W)


def se_reference(x, w1, w2):
    """Pure-JAX reference mirroring the PyTorch SELayer forward pass."""
    y = jnp.mean(x.astype(jnp.float32), axis=(2, 3))                        # (B, C)
    h = jnp.maximum(jnp.dot(y, w1.T.astype(jnp.float32),
                            precision=jax.lax.Precision.HIGHEST), 0.0)      # (B, C//r)
    s = jax.nn.sigmoid(jnp.dot(h, w2.T.astype(jnp.float32),
                               precision=jax.lax.Precision.HIGHEST))        # (B, C)
    return (x.astype(jnp.float32) * s[:, :, None, None]).astype(x.dtype)


if __name__ == "__main__":
    # Small shapes consistent with the module: channel // reduction must be >= 1.
    B, C, H, W = 2, 64, 16, 16
    reduction = 16
    Cr = C // reduction   # 4

    key = jax.random.PRNGKey(0)
    kx, k1, k2, kx2 = jax.random.split(key, 4)
    x = jax.random.normal(kx, (B, C, H, W), dtype=jnp.float32)
    # PyTorch nn.Linear(C, Cr, bias=False).weight -> (Cr, C); Linear(Cr, C) -> (C, Cr).
    w1 = jax.random.normal(k1, (Cr, C), dtype=jnp.float32) * 0.1
    w2 = jax.random.normal(k2, (C, Cr), dtype=jnp.float32) * 0.1

    # NOTE: for bf16 inputs use dtype-appropriate tolerances; these are f32 inputs.
    # 1) Primary fused single-pass path (HW a multiple of 128).
    y = jax.block_until_ready(se_forward(x, w1, w2))
    assert jnp.allclose(y, se_reference(x, w1, w2), atol=1e-5, rtol=1e-4), \
        "single-pass mismatch vs reference"

    # 2) Non-128-multiple spatial extent: exercises the unpadded masked-tail path.
    x_odd = jax.random.normal(kx2, (B, C, 15, 15), dtype=jnp.float32)
    y_odd = jax.block_until_ready(se_forward(x_odd, w1, w2))
    assert jnp.allclose(y_odd, se_reference(x_odd, w1, w2), atol=1e-5, rtol=1e-4), \
        "odd-HW single-pass mismatch vs reference"

    # 3) Two-pass fallback, forced at a small shape (validates the large-image path,
    #    including masked tail accumulation across HW tiles).
    y_tp = jax.block_until_ready(
        se_forward(x_odd, w1, w2, force_two_pass=True, two_pass_hw_tile=128))
    assert jnp.allclose(y_tp, se_reference(x_odd, w1, w2), atol=1e-5, rtol=1e-4), \
        "two-pass mismatch vs reference"

    print("KERNEL_OK")
</pallas_src>

<mosaic_0001>
module attributes {stable_mosaic.version = 11 : i64} {
  func.func @_se_fused_kernel(%arg0: i32, %arg1: memref<1x64x256xf32, #tpu.memory_space<vmem>>, %arg2: memref<64x4xf32, #tpu.memory_space<vmem>>, %arg3: memref<4x64xf32, #tpu.memory_space<vmem>>, %arg4: memref<1x64x256xf32, #tpu.memory_space<vmem>>) attributes {dimension_semantics = [#tpu.dimension_semantics<parallel>], iteration_bounds = array<i64: 2>, scalar_prefetch = 0 : i64, scratch_operands = 0 : i64, tpu.core_type = #tpu.core_type<tc>, window_params = [{transform_indices = @transform_0, window_bounds = array<i64: 1, 64, 256>}, {pipeline_mode = #tpu.pipeline_mode<synchronous>, transform_indices = @transform_1, window_bounds = array<i64: 64, 4>}, {pipeline_mode = #tpu.pipeline_mode<synchronous>, transform_indices = @transform_2, window_bounds = array<i64: 4, 64>}, {transform_indices = @transform_3, window_bounds = array<i64: 1, 64, 256>}]} {
    %c0 = arith.constant 0 : index
    %c0_0 = arith.constant 0 : index
    %c0_1 = arith.constant 0 : index
    %0 = vector.load %arg1[%c0, %c0_0, %c0_1] : memref<1x64x256xf32, #tpu.memory_space<vmem>>, vector<1x64x256xf32>
    %cst = arith.constant dense<0.000000e+00> : vector<1x64xf32>
    %1 = vector.multi_reduction <add>, %0, %cst [2] : vector<1x64x256xf32> to vector<1x64xf32>
    %cst_2 = arith.constant 3.906250e-03 : f32
    %2 = vector.broadcast %cst_2 : f32 to vector<1x64xf32>
    %3 = arith.mulf %1, %2 : vector<1x64xf32>
    %c0_3 = arith.constant 0 : index
    %c0_4 = arith.constant 0 : index
    %4 = vector.load %arg2[%c0_3, %c0_4] : memref<64x4xf32, #tpu.memory_space<vmem>>, vector<64x4xf32>
    %cst_5 = arith.constant dense<0.000000e+00> : vector<1x4xf32>
    %5 = tpu.matmul %3, %4, %cst_5 {dimension_numbers = #tpu.dot_dimension_numbers<[1], [0], [0], [1], [0, 0, 1, 1], [], []>, precision = #tpu.contract_precision<fp32>} : vector<1x64xf32>, vector<64x4xf32>, vector<1x4xf32> -> vector<1x4xf32>
    %cst_6 = arith.constant 0.000000e+00 : f32
    %6 = vector.broadcast %cst_6 : f32 to vector<1x4xf32>
    %7 = arith.maximumf %5, %6 : vector<1x4xf32>
    %c0_7 = arith.constant 0 : index
    %c0_8 = arith.constant 0 : index
    %8 = vector.load %arg3[%c0_7, %c0_8] : memref<4x64xf32, #tpu.memory_space<vmem>>, vector<4x64xf32>
    %cst_9 = arith.constant dense<0.000000e+00> : vector<1x64xf32>
    %9 = tpu.matmul %7, %8, %cst_9 {dimension_numbers = #tpu.dot_dimension_numbers<[1], [0], [0], [1], [0, 0, 1, 1], [], []>, precision = #tpu.contract_precision<fp32>} : vector<1x4xf32>, vector<4x64xf32>, vector<1x64xf32> -> vector<1x64xf32>
    %10 = arith.negf %9 : vector<1x64xf32>
    %11 = math.exp %10 : vector<1x64xf32>
    %cst_10 = arith.constant 1.000000e+00 : f32
    %12 = vector.broadcast %cst_10 : f32 to vector<1x64xf32>
    %13 = arith.addf %12, %11 : vector<1x64xf32>
    %14 = arith.divf %12, %13 : vector<1x64xf32>
    %15 = vector.shape_cast %14 : vector<1x64xf32> to vector<1x64x1xf32>
    %16 = vector.broadcast %15 : vector<1x64x1xf32> to vector<1x64x256xf32>
    %17 = arith.mulf %0, %16 : vector<1x64x256xf32>
    %c0_11 = arith.constant 0 : index
    %c0_12 = arith.constant 0 : index
    %c0_13 = arith.constant 0 : index
    %18 = vector.load %arg4[%c0_11, %c0_12, %c0_13] : memref<1x64x256xf32, #tpu.memory_space<vmem>>, vector<1x64x256xf32>
    tpu.vector_store %arg4[%c0_11, %c0_12, %c0_13], %17 {strides = array<i32>} : memref<1x64x256xf32, #tpu.memory_space<vmem>>, vector<1x64x256xf32>,
    return
  }
  func.func @transform_0(%arg0: i32) -> (i32, i32, i32) {
    %c0_i32 = arith.constant 0 : i32
    %c0_i32_0 = arith.constant 0 : i32
    %c0_i32_1 = arith.constant 0 : i32
    return %arg0, %c0_i32, %c0_i32_0 : i32, i32, i32
  }
  func.func @transform_1(%arg0: i32) -> (i32, i32) {
    %c0_i32 = arith.constant 0 : i32
    %c0_i32_0 = arith.constant 0 : i32
    %c0_i32_1 = arith.constant 0 : i32
    return %c0_i32, %c0_i32_0 : i32, i32
  }
  func.func @transform_2(%arg0: i32) -> (i32, i32) {
    %c0_i32 = arith.constant 0 : i32
    %c0_i32_0 = arith.constant 0 : i32
    %c0_i32_1 = arith.constant 0 : i32
    return %c0_i32, %c0_i32_0 : i32, i32
  }
  func.func @transform_3(%arg0: i32) -> (i32, i32, i32) {
    %c0_i32 = arith.constant 0 : i32
    %c0_i32_0 = arith.constant 0 : i32
    %c0_i32_1 = arith.constant 0 : i32
    return %arg0, %c0_i32, %c0_i32_0 : i32, i32, i32
  }
}

</mosaic_0001>

<llo_original>
// kernel: tpu_custom_call.1
$region0: #{tpu_custom_call.1}
  #allocation0 [shape = 'u32[]', space=smem, size = 0x4, offset = 0x4, fixed_abs, tag = 'smem constant byte address 0x4 - core index']
  #allocation1 [shape = 'u32[144,128]{1,0:T(1,128)}', space=vmem, size = 0x12000, scoped, tag = 'internal scratch']
  %s0 = inlined_call_operand.hbm [shape: f32[2,64,256], index: 0, kind: input, shape index: {}]
  %s1 = inlined_call_operand.vmem [shape: f32[64,4], index: 1, kind: input, shape index: {}]
  %s2 = inlined_call_operand.vmem [shape: f32[4,64], index: 2, kind: input, shape index: {}]
  %s3 = inlined_call_operand.hbm [shape: f32[2,64,256], index: 3, kind: output, shape index: {}]
  %s4 = sld [smem:[#allocation0]]
  $region49: #{tpu_custom_call.1} parent=0
    _
  %s6 = ssub.s32 1, %s4
  %s7 = scalar_select 0, %s6, %s4
  $region1: #{tpu_custom_call.1} parent=0
    #allocation2 [shape = 'u8[131072]{0}', space=vmem, size = 0x20000, scoped, tag = 'input window, operand 0']
    #allocation3 [shape = 's32[2]{0}', space=sflag, size = 0x8, scoped, tag = 'scoped memory for tpu_custom_call.1']
    #allocation4 [shape = 's32[2]{0}', space=sflag, size = 0x8, scoped, tag = 'scoped memory for tpu_custom_call.1']
    #allocation5 [shape = 'u8[131072]{0}', space=vmem, size = 0x20000, scoped, tag = 'output window, operand 0']
    %8 = vsyncpa [#allocation3], 0
    %s9 = scalar_lea.sflag [#allocation3], 1
    %10 = vsyncpa %s9, 0
    %11 = vsyncpa [#allocation4], 0
    %s12 = scalar_lea.sflag [#allocation4], 1
    %13 = vsyncpa %s12, 0
    loop: start=0, step=1, limit=4
    $region2: #{tpu_custom_call.1} parent=1 // loop_pre_header
      _
    $region3: #{tpu_custom_call.1} parent=1 // loop_header
      %s15 = sphi 0, %s19
      %p16 = scmp.ge.s32.totalorder %s15, 4
      %s25 = sphi 0, %s27
      %s28 = sphi 0, %s25
      %s29 = sphi 0, %s28
      %s45 = sphi 0, %s29
      %s49 = sphi 0, %s49
      %s51 = sphi 0, %s49
      %s52 = sphi 0, %s51
      %s66 = sphi 0, %s52
      %s70 = sphi 0, %s70
      %s72 = sphi 0, %s70
      %s73 = sphi 0, %s72
      %s87 = sphi 0, %s73
      %s93 = sphi 0, %s95
      %s96 = sphi 0, %s93
      %s97 = sphi 0, %s96
      %s113 = sphi 0, %s97
    $region4: #{tpu_custom_call.1} parent=1 // loop_header_branch
      %18 = sbr.rel (%p16) target = $region8
    $region5: #{tpu_custom_call.1} parent=1 // loop_body
      %s20 = ssub.s32 %s15, 1
      %s21 = ssub.s32 %s15, 2
      %s22 = sadd.s32 %s15, 1
      %s23 = ssub.s32 %s15, %s22
      %p24 = scmp.eq.s32.totalorder %s23, 0
      %s26 = sadd.s32 %s25, 1
      %s27 = scalar_select %p24, %s25, %s26
      %p30 = pneg %p24
      %p31 = scmp.eq.s32.totalorder %s15, 1
      %p32 = por %p30, %p31
      %p33 = scmp.ne.s32.totalorder %s25, %s28
      %p34 = scmp.eq.s32.totalorder %s15, 0
      %p35 = por %p33, %p34
      %p36 = scmp.ne.s32.totalorder %s25, %s28
      %p37 = scmp.eq.s32.totalorder %s20, 1
      %p38 = por %p36, %p37
      %p39 = scmp.ne.s32.totalorder %s28, %s29
      %p40 = scmp.eq.s32.totalorder %s20, 0
      %p41 = por %p39, %p40
      %p42 = scmp.ne.s32.totalorder %s28, %s29
      %p43 = scmp.eq.s32.totalorder %s21, 1
      %p44 = por %p42, %p43
      %p46 = scmp.ne.s32.totalorder %s29, %s45
      %p47 = scmp.eq.s32.totalorder %s21, 0
      %p48 = por %p46, %p47
      %s50 = sadd.s32 %s49, 1
      %p53 = scmp.eq.s32.totalorder %s15, 1
      %p54 = scmp.ne.s32.totalorder %s49, %s51
      %p55 = scmp.eq.s32.totalorder %s15, 0
      %p56 = por %p54, %p55
      %p57 = scmp.ne.s32.totalorder %s49, %s51
      %p58 = scmp.eq.s32.totalorder %s20, 1
      %p59 = por %p57, %p58
      %p60 = scmp.ne.s32.totalorder %s51, %s52
      %p61 = scmp.eq.s32.totalorder %s20, 0
      %p62 = por %p60, %p61
      %p63 = scmp.ne.s32.totalorder %s51, %s52
      %p64 = scmp.eq.s32.totalorder %s21, 1
      %p65 = por %p63, %p64
      %p67 = scmp.ne.s32.totalorder %s52, %s66
      %p68 = scmp.eq.s32.totalorder %s21, 0
      %p69 = por %p67, %p68
      %s71 = sadd.s32 %s70, 1
      %p74 = scmp.eq.s32.totalorder %s15, 1
      %p75 = scmp.ne.s32.totalorder %s70, %s72
      %p76 = scmp.eq.s32.totalorder %s15, 0
      %p77 = por %p75, %p76
      %p78 = scmp.ne.s32.totalorder %s70, %s72
      %p79 = scmp.eq.s32.totalorder %s20, 1
      %p80 = por %p78, %p79
      %p81 = scmp.ne.s32.totalorder %s72, %s73
      %p82 = scmp.eq.s32.totalorder %s20, 0
      %p83 = por %p81, %p82
      %p84 = scmp.ne.s32.totalorder %s72, %s73
      %p85 = scmp.eq.s32.totalorder %s21, 1
      %p86 = por %p84, %p85
      %p88 = scmp.ne.s32.totalorder %s73, %s87
      %p89 = scmp.eq.s32.totalorder %s21, 0
      %p90 = por %p88, %p89
      %s91 = ssub.s32 %s15, %s22
      %p92 = scmp.eq.s32.totalorder %s91, 0
      %s94 = sadd.s32 %s93, 1
      %s95 = scalar_select %p92, %s93, %s94
      %p98 = pneg %p92
      %p99 = scmp.eq.s32.totalorder %s15, 1
      %p100 = por %p98, %p99
      %p101 = scmp.ne.s32.totalorder %s93, %s96
      %p102 = scmp.eq.s32.totalorder %s15, 0
      %p103 = por %p101, %p102
      %p104 = scmp.ne.s32.totalorder %s93, %s96
      %p105 = scmp.eq.s32.totalorder %s20, 1
      %p106 = por %p104, %p105
      %p107 = scmp.ne.s32.totalorder %s96, %s97
      %p108 = scmp.eq.s32.totalorder %s20, 0
      %p109 = por %p107, %p108
      %p110 = scmp.ne.s32.totalorder %s96, %s97
      %p111 = scmp.eq.s32.totalorder %s21, 1
      %p112 = por %p110, %p111
      %p114 = scmp.ne.s32.totalorder %s97, %s113
      %p115 = scmp.eq.s32.totalorder %s21, 0
      %p116 = por %p114, %p115
      %p117 = scmp.le.s32.totalorder 1, %s15
      %p118 = scmp.lt.s32.totalorder %s15, 3
      %p119 = pnand %p117, %p118
      %p120 = pneg %p119
      // Predicated region
      $region9: #{tpu_custom_call.1} parent=5 // pred_check
        _
      $region10: #{tpu_custom_call.1} parent=5 // pred_check_branch
        %122 = sbr.rel (%p119) target = $region12
      $region11: #{tpu_custom_call.1} parent=5 // pred_region
        %s123 = ssub.s32 %s15, 1
        // Predicated region
        $region13: #{tpu_custom_call.1} parent=11 // pred_check
          %p124 = pneg %p62
        $region14: #{tpu_custom_call.1} parent=11 // pred_check_branch
          %126 = sbr.rel (%p124) target = $region16
        $region15: #{tpu_custom_call.1} parent=11 // pred_region
          _
        $region16: #{tpu_custom_call.1} parent=11 // pred_fallthru
          _
        // Predicated region
        $region17: #{tpu_custom_call.1} parent=11 // pred_check
          %p127 = pneg %p83
        $region18: #{tpu_custom_call.1} parent=11 // pred_check_branch
          %129 = sbr.rel (%p127) target = $region20
        $region19: #{tpu_custom_call.1} parent=11 // pred_region
          _
        $region20: #{tpu_custom_call.1} parent=11 // pred_fallthru
          _
      $region12: #{tpu_custom_call.1} parent=5 // pred_fallthru
        _
      %p130 = scmp.lt.s32.totalorder %s15, 2
      // Predicated region
      $region21: #{tpu_custom_call.1} parent=5 // pred_check
        %p131 = pneg %p130
      $region22: #{tpu_custom_call.1} parent=5 // pred_check_branch
        %133 = sbr.rel (%p131) target = $region24
      $region23: #{tpu_custom_call.1} parent=5 // pred_region
        // Predicated region
        $region25: #{tpu_custom_call.1} parent=23 // pred_check
          %p134 = pneg %p35
        $region26: #{tpu_custom_call.1} parent=23 // pred_check_branch
          %136 = sbr.rel (%p134) target = $region28
        $region27: #{tpu_custom_call.1} parent=23 // pred_region
          %s137 = sand.u32 %s25, 1
          %s138 = scalar_lea.sflag [#allocation3], %s137
          %s139 = sand.u32 %s25, 1
          %s140 = smul.addr %s139, 128
          %s141 = scalar_lea.vmem [#allocation2], %s140
          %s143 = ssub.s32 2048, 2048
          %144 = vsyncadd %s138, %s143
          %s145 = smul.addr %s15, 16
          %s146 = smul.addr %s145, 128
          %s147 = scalar_lea.hbm %s0, %s146
          %s148 = sshll.u32 %s141, 4
          %s149 = int_to_ptr.vmem [resolvable:$true] %s148
          %154 = dma.hbm_to_vmem [thread:$0]  %s147, 2048, %s149, %s138, 256, 256, 16
        $region28: #{tpu_custom_call.1} parent=23 // pred_fallthru
          _
      $region24: #{tpu_custom_call.1} parent=5 // pred_fallthru
        _
      %p155 = scmp.le.s32.totalorder 1, %s15
      %p156 = scmp.lt.s32.totalorder %s15, 3
      %p157 = pnand %p155, %p156
      %p158 = pneg %p157
      // Predicated region
      $region29: #{tpu_custom_call.1} parent=5 // pred_check
        _
      $region30: #{tpu_custom_call.1} parent=5 // pred_check_branch
        %160 = sbr.rel (%p157) target = $region32
      $region31: #{tpu_custom_call.1} parent=5 // pred_region
        %s161 = ssub.s32 %s15, 1
        %s162 = sand.u32 %s28, 1
        %s163 = scalar_lea.sflag [#allocation3], %s162
        %s164 = sand.u32 %s28, 1
        %s165 = smul.addr %s164, 128
        %s166 = scalar_lea.vmem [#allocation2], %s165
        // Predicated region
        $region33: #{tpu_custom_call.1} parent=31 // pred_check
          %p167 = pneg %p41
        $region34: #{tpu_custom_call.1} parent=31 // pred_check_branch
          %169 = sbr.rel (%p167) target = $region36
        $region35: #{tpu_custom_call.1} parent=31 // pred_region
          %170 = dma.done %s163, 2048
        $region36: #{tpu_custom_call.1} parent=31 // pred_fallthru
          _
        %s171 = sand.u32 %s28, 1
        %s172 = scalar_lea.sflag [#allocation3], %s171
        %s173 = sand.u32 %s28, 1
        %s174 = smul.addr %s173, 128
        %s175 = scalar_lea.vmem [#allocation2], %s174
        %p176 = pneg %p41
        %p177 = pneg %p38
        %p178 = pneg %p62
        %p179 = pneg %p59
        %p180 = pneg %p83
        %p181 = pneg %p80
        %p182 = pneg %p109
        %p183 = pneg %p106
        %s184 = sand.u32 %s96, 1
        %s185 = scalar_lea.sflag [#allocation4], %s184
        %s186 = sand.u32 %s96, 1
        %s187 = smul.addr %s186, 128
        %s188 = scalar_lea.vmem [#allocation5], %s187
        %v189 = vld [vmem:[%s166] sm:$0xff]
        %v190 = vld [vmem:[%s166 + $0x8] sm:$0xff]
        %v191 = vld [vmem:[%s166 + $0x10] sm:$0xff]
        %v192 = vld [vmem:[%s166 + $0x18] sm:$0xff]
        %v193 = vld [vmem:[%s166 + $0x20] sm:$0xff]
        %v194 = vld [vmem:[%s166 + $0x28] sm:$0xff]
        %v195 = vld [vmem:[%s166 + $0x30] sm:$0xff]
        %v196 = vld [vmem:[%s166 + $0x38] sm:$0xff]
        %v197 = vld [vmem:[%s166 + $0x40] sm:$0xff]
        %v198 = vld [vmem:[%s166 + $0x48] sm:$0xff]
        %v199 = vld [vmem:[%s166 + $0x50] sm:$0xff]
        %v200 = vld [vmem:[%s166 + $0x58] sm:$0xff]
        %v201 = vld [vmem:[%s166 + $0x60] sm:$0xff]
        %v202 = vld [vmem:[%s166 + $0x68] sm:$0xff]
        %v203 = vld [vmem:[%s166 + $0x70] sm:$0xff]
        %v204 = vld [vmem:[%s166 + $0x78] sm:$0xff]
        %v205 = vadd.f32 %v189, %v190
        %206 = vadd.xlane.f32.xlu0 %v205
        %v207 = vpop.xlane.xlu0 %206
        %v208 = vadd.f32 %v191, %v192
        %209 = vadd.xlane.f32.xlu0 %v208
        %v210 = vpop.xlane.xlu0 %209
        %v211 = vadd.f32 %v193, %v194
        %212 = vadd.xlane.f32.xlu0 %v211
        %v213 = vpop.xlane.xlu0 %212
        %v214 = vadd.f32 %v195, %v196
        %215 = vadd.xlane.f32.xlu0 %v214
        %v216 = vpop.xlane.xlu0 %215
        %v217 = vadd.f32 %v197, %v198
        %218 = vadd.xlane.f32.xlu0 %v217
        %v219 = vpop.xlane.xlu0 %218
        %v220 = vadd.f32 %v199, %v200
        %221 = vadd.xlane.f32.xlu0 %v220
        %v222 = vpop.xlane.xlu0 %221
        %v223 = vadd.f32 %v201, %v202
        %224 = vadd.xlane.f32.xlu0 %v223
        %v225 = vpop.xlane.xlu0 %224
        %v226 = vadd.f32 %v203, %v204
        %227 = vadd.xlane.f32.xlu0 %v226
        %v228 = vpop.xlane.xlu0 %227
        %v229 = vmul.f32 %v207, 0.00390625
        %v230 = vmul.f32 %v210, 0.00390625
        %v231 = vmul.f32 %v213, 0.00390625
        %v232 = vmul.f32 %v216, 0.00390625
        %v233 = vmul.f32 %v219, 0.00390625
        %v234 = vmul.f32 %v222, 0.00390625
        %v235 = vmul.f32 %v225, 0.00390625
        %v236 = vmul.f32 %v228, 0.00390625
        %v237 = vld [vmem:[%s1] sm:$0xff]
        %v238 = vld [vmem:[%s1 + $0x8] sm:$0xff]
        %v239 = vld [vmem:[%s1 + $0x10] sm:$0xff]
        %v240 = vld [vmem:[%s1 + $0x18] sm:$0xff]
        %v241 = vld [vmem:[%s1 + $0x20] sm:$0xff]
        %v242 = vld [vmem:[%s1 + $0x28] sm:$0xff]
        %v243 = vld [vmem:[%s1 + $0x30] sm:$0xff]
        %v244 = vld [vmem:[%s1 + $0x38] sm:$0xff]
        %v253 = vlaneseq
        %v254 = vand.u32 %v253, 127
        %v255 = vlaneseq
        %v256 = vshrl.u32 %v255, 7
        %v257 = vsub.s32 %v254, %v256
        %v258 = vrot.slane %v229, %v257
        %v259 = vadd.s32 %v254, 4294967288
        %v260 = vlaneseq
        %v261 = vshrl.u32 %v260, 7
        %v262 = vsub.s32 %v259, %v261
        %v263 = vrot.slane %v230, %v262
        %vm264 = vcmask 130112
        %v265 = vsel %vm264, %v263, %v258
        %v266 = vadd.s32 %v254, 4294967280
        %v267 = vlaneseq
        %v268 = vshrl.u32 %v267, 7
        %v269 = vsub.s32 %v266, %v268
        %v270 = vrot.slane %v231, %v269
        %vm271 = vcmask 195712
        %v272 = vsel %vm271, %v270, %v265
        %v273 = vadd.s32 %v254, 4294967272
        %v274 = vlaneseq
        %v275 = vshrl.u32 %v274, 7
        %v276 = vsub.s32 %v273, %v275
        %v277 = vrot.slane %v232, %v276
        %vm278 = vcmask 261312
        %v279 = vsel %vm278, %v277, %v272
        %v280 = vadd.s32 %v254, 4294967264
        %v281 = vlaneseq
        %v282 = vshrl.u32 %v281, 7
        %v283 = vsub.s32 %v280, %v282
        %v284 = vrot.slane %v233, %v283
        %vm285 = vcmask 326912
        %v286 = vsel %vm285, %v284, %v279
        %v287 = vadd.s32 %v254, 4294967256
        %v288 = vlaneseq
        %v289 = vshrl.u32 %v288, 7
        %v290 = vsub.s32 %v287, %v289
        %v291 = vrot.slane %v234, %v290
        %vm292 = vcmask 392512
        %v293 = vsel %vm292, %v291, %v286
        %v294 = vadd.s32 %v254, 4294967248
        %v295 = vlaneseq
        %v296 = vshrl.u32 %v295, 7
        %v297 = vsub.s32 %v294, %v296
        %v298 = vrot.slane %v235, %v297
        %vm299 = vcmask 458112
        %v300 = vsel %vm299, %v298, %v293
        %v301 = vadd.s32 %v254, 4294967240
        %v302 = vlaneseq
        %v303 = vshrl.u32 %v302, 7
        %v304 = vsub.s32 %v301, %v303
        %v305 = vrot.slane %v236, %v304
        %vm306 = vcmask 523712
        %v307 = vsel %vm306, %v305, %v300
        %vm308 = vcmask 523264
        %v309 = vsel %vm308, %v307, 0
        %311 = vmatprep.subr.mxu0 0.0
        %v312 = vand.u32 %v237, 4294901760
        %313 = vmatpush1.msra.mxu0 %v312
        %314 = vmatprep.subr.mxu0 0.0
        %v315 = vand.u32 %v238, 4294901760
        %316 = vmatpush1.msra.mxu0 %v315
        %317 = vmatprep.subr.mxu0 0.0
        %v318 = vand.u32 %v239, 4294901760
        %319 = vmatpush1.msra.mxu0 %v318
        %320 = vmatprep.subr.mxu0 0.0
        %v321 = vand.u32 %v240, 4294901760
        %322 = vmatpush1.msra.mxu0 %v321
        %323 = vmatprep.subr.mxu0 0.0
        %v324 = vand.u32 %v241, 4294901760
        %325 = vmatpush1.msra.mxu0 %v324
        %326 = vmatprep.subr.mxu0 0.0
        %v327 = vand.u32 %v242, 4294901760
        %328 = vmatpush1.msra.mxu0 %v327
        %329 = vmatprep.subr.mxu0 0.0
        %v330 = vand.u32 %v243, 4294901760
        %331 = vmatpush1.msra.mxu0 %v330
        %332 = vmatprep.subr.mxu0 0.0
        %v333 = vand.u32 %v244, 4294901760
        %334 = vmatpush1.msra.mxu0 %v333
        %335 = vmatprep.subr.mxu0 0.0
        %336 = vmatpush1.msra.mxu0 0.0
        %337 = vmatprep.subr.mxu0 0.0
        %338 = vmatpush1.msra.mxu0 0.0
        %339 = vmatprep.subr.mxu0 0.0
        %340 = vmatpush1.msra.mxu0 0.0
        %341 = vmatprep.subr.mxu0 0.0
        %342 = vmatpush1.msra.mxu0 0.0
        %343 = vmatprep.subr.mxu0 0.0
        %344 = vmatpush1.msra.mxu0 0.0
        %345 = vmatprep.subr.mxu0 0.0
        %346 = vmatpush1.msra.mxu0 0.0
        %347 = vmatprep.subr.mxu0 0.0
        %348 = vmatpush1.msra.mxu0 0.0
        %349 = vmatprep.subr.mxu0 0.0
        %350 = vmatpush1.msra.mxu0 0.0
        %351 = vmatprep.subr.mxu0 0.0
        %352 = vmatpush1.msra.mxu0 0.0
        %353 = vmatprep.subr.mxu0 0.0
        %354 = vmatpush1.msra.mxu0 0.0
        %355 = vmatprep.subr.mxu0 0.0
        %356 = vmatpush1.msra.mxu0 0.0
        %357 = vmatprep.subr.mxu0 0.0
        %358 = vmatpush1.msra.mxu0 0.0
        %359 = vmatprep.subr.mxu0 0.0
        %360 = vmatpush1.msra.mxu0 0.0
        %361 = vmatprep.subr.mxu0 0.0
        %362 = vmatpush1.msra.mxu0 0.0
        %363 = vmatprep.subr.mxu0 0.0
        %364 = vmatpush1.msra.mxu0 0.0
        %365 = vmatprep.subr.mxu0 0.0
        %366 = vmatpush1.msra.mxu0 0.0
        %367 = vmatprep.subr.mxu0 0.0
        %368 = vmatpush1.msra.mxu0 0.0
        %369 = vmatprep.subr.mxu0 0.0
        %370 = vmatpush1.msra.mxu0 0.0
        %371 = vmatprep.subr.mxu0 0.0
        %372 = vmatpush1.msra.mxu0 0.0
        %373 = vmatprep.subr.mxu0 0.0
        %374 = vmatpush1.msra.mxu0 0.0
        %375 = vmatprep.subr.mxu0 0.0
        %376 = vmatpush1.msra.mxu0 0.0
        %377 = vmatprep.subr.mxu0 0.0
        %378 = vmatpush1.msra.mxu0 0.0
        %379 = vmatprep.subr.mxu0 0.0
        %380 = vmatpush1.msra.mxu0 0.0
        %381 = vmatprep.subr.mxu0 0.0
        %382 = vmatpush1.msra.mxu0 0.0
        %383 = vmatprep.mubr.f32.mxu0 0.0
        %v384 = vand.u32 %v309, 4294901760
        %v385 = vsub.f32 %v309, %v384
        %v386 = vand.u32 %v385, 4294901760
        %v387 = vsub.f32 %v385, %v386
        %v388 = vand.u32 %v387, 4294901760
        %389 = vmatmul.mubr.f32.gmra.mrb[0].mxu0 %v388
        %v390 = vpop.f32.mrb[0].mxu0
        %v391 = vadd.f32 0.0, %v390
        %v392 = vpop.f32.mrb[0].mxu0
        %393 = vdwg.mxu0
        %394 = vmatprep.subr.mxu0 0.0
        %v395 = vand.u32 %v237, 4294901760
        %v396 = vsub.f32 %v237, %v395
        %v397 = vand.u32 %v396, 4294901760
        %v398 = vsub.f32 %v396, %v397
        %v399 = vand.u32 %v398, 4294901760
        %400 = vmatpush1.msra.mxu0 %v399
        %401 = vmatprep.subr.mxu0 0.0
        %v402 = vand.u32 %v238, 4294901760
        %v403 = vsub.f32 %v238, %v402
        %v404 = vand.u32 %v403, 4294901760
        %v405 = vsub.f32 %v403, %v404
        %v406 = vand.u32 %v405, 4294901760
        %407 = vmatpush1.msra.mxu0 %v406
        %408 = vmatprep.subr.mxu0 0.0
        %v409 = vand.u32 %v239, 4294901760
        %v410 = vsub.f32 %v239, %v409
        %v411 = vand.u32 %v410, 4294901760
        %v412 = vsub.f32 %v410, %v411
        %v413 = vand.u32 %v412, 4294901760
        %414 = vmatpush1.msra.mxu0 %v413
        %415 = vmatprep.subr.mxu0 0.0
        %v416 = vand.u32 %v240, 4294901760
        %v417 = vsub.f32 %v240, %v416
        %v418 = vand.u32 %v417, 4294901760
        %v419 = vsub.f32 %v417, %v418
        %v420 = vand.u32 %v419, 4294901760
        %421 = vmatpush1.msra.mxu0 %v420
        %422 = vmatprep.subr.mxu0 0.0
        %v423 = vand.u32 %v241, 4294901760
        %v424 = vsub.f32 %v241, %v423
        %v425 = vand.u32 %v424, 4294901760
        %v426 = vsub.f32 %v424, %v425
        %v427 = vand.u32 %v426, 4294901760
        %428 = vmatpush1.msra.mxu0 %v427
        %429 = vmatprep.subr.mxu0 0.0
        %v430 = vand.u32 %v242, 4294901760
        %v431 = vsub.f32 %v242, %v430
        %v432 = vand.u32 %v431, 4294901760
        %v433 = vsub.f32 %v431, %v432
        %v434 = vand.u32 %v433, 4294901760
        %435 = vmatpush1.msra.mxu0 %v434
        %436 = vmatprep.subr.mxu0 0.0
        %v437 = vand.u32 %v243, 4294901760
        %v438 = vsub.f32 %v243, %v437
        %v439 = vand.u32 %v438, 4294901760
        %v440 = vsub.f32 %v438, %v439
        %v441 = vand.u32 %v440, 4294901760
        %442 = vmatpush1.msra.mxu0 %v441
        %443 = vmatprep.subr.mxu0 0.0
        %v444 = vand.u32 %v244, 4294901760
        %v445 = vsub.f32 %v244, %v444
        %v446 = vand.u32 %v445, 4294901760
        %v447 = vsub.f32 %v445, %v446
        %v448 = vand.u32 %v447, 4294901760
        %449 = vmatpush1.msra.mxu0 %v448
        %450 = vmatprep.subr.mxu0 0.0
        %451 = vmatpush1.msra.mxu0 0.0
        %452 = vmatprep.subr.mxu0 0.0
        %453 = vmatpush1.msra.mxu0 0.0
        %454 = vmatprep.subr.mxu0 0.0
        %455 = vmatpush1.msra.mxu0 0.0
        %456 = vmatprep.subr.mxu0 0.0
        %457 = vmatpush1.msra.mxu0 0.0
        %458 = vmatprep.subr.mxu0 0.0
        %459 = vmatpush1.msra.mxu0 0.0
        %460 = vmatprep.subr.mxu0 0.0
        %461 = vmatpush1.msra.mxu0 0.0
        %462 = vmatprep.subr.mxu0 0.0
        %463 = vmatpush1.msra.mxu0 0.0
        %464 = vmatprep.subr.mxu0 0.0
        %465 = vmatpush1.msra.mxu0 0.0
        %466 = vmatprep.subr.mxu0 0.0
        %467 = vmatpush1.msra.mxu0 0.0
        %468 = vmatprep.subr.mxu0 0.0
        %469 = vmatpush1.msra.mxu0 0.0
        %470 = vmatprep.subr.mxu0 0.0
        %471 = vmatpush1.msra.mxu0 0.0
        %472 = vmatprep.subr.mxu0 0.0
        %473 = vmatpush1.msra.mxu0 0.0
        %474 = vmatprep.subr.mxu0 0.0
        %475 = vmatpush1.msra.mxu0 0.0
        %476 = vmatprep.subr.mxu0 0.0
        %477 = vmatpush1.msra.mxu0 0.0
        %478 = vmatprep.subr.mxu0 0.0
        %479 = vmatpush1.msra.mxu0 0.0
        %480 = vmatprep.subr.mxu0 0.0
        %481 = vmatpush1.msra.mxu0 0.0
        %482 = vmatprep.subr.mxu0 0.0
        %483 = vmatpush1.msra.mxu0 0.0
        %484 = vmatprep.subr.mxu0 0.0
        %485 = vmatpush1.msra.mxu0 0.0
        %486 = vmatprep.subr.mxu0 0.0
        %487 = vmatpush1.msra.mxu0 0.0
        %488 = vmatprep.subr.mxu0 0.0
        %489 = vmatpush1.msra.mxu0 0.0
        %490 = vmatprep.subr.mxu0 0.0
        %491 = vmatpush1.msra.mxu0 0.0
        %492 = vmatprep.subr.mxu0 0.0
        %493 = vmatpush1.msra.mxu0 0.0
        %494 = vmatprep.subr.mxu0 0.0
        %495 = vmatpush1.msra.mxu0 0.0
        %496 = vmatprep.subr.mxu0 0.0
        %497 = vmatpush1.msra.mxu0 0.0
        %498 = vmatprep.mubr.f32.mxu0 0.0
        %v499 = vand.u32 %v309, 4294901760
        %500 = vmatmul.mubr.f32.gmra.mrb[0].mxu0 %v499
        %v501 = vpop.f32.mrb[0].mxu0
        %v502 = vadd.f32 %v391, %v501
        %v503 = vpop.f32.mrb[0].mxu0
        %504 = vdwg.mxu0
        %505 = vmatprep.subr.mxu0 0.0
        %v506 = vand.u32 %v237, 4294901760
        %v507 = vsub.f32 %v237, %v506
        %508 = vmatpush1.msra.mxu0 %v507
        %509 = vmatprep.subr.mxu0 0.0
        %v510 = vand.u32 %v238, 4294901760
        %v511 = vsub.f32 %v238, %v510
        %512 = vmatpush1.msra.mxu0 %v511
        %513 = vmatprep.subr.mxu0 0.0
        %v514 = vand.u32 %v239, 4294901760
        %v515 = vsub.f32 %v239, %v514
        %516 = vmatpush1.msra.mxu0 %v515
        %517 = vmatprep.subr.mxu0 0.0
        %v518 = vand.u32 %v240, 4294901760
        %v519 = vsub.f32 %v240, %v518
        %520 = vmatpush1.msra.mxu0 %v519
        %521 = vmatprep.subr.mxu0 0.0
        %v522 = vand.u32 %v241, 4294901760
        %v523 = vsub.f32 %v241, %v522
        %524 = vmatpush1.msra.mxu0 %v523
        %525 = vmatprep.subr.mxu0 0.0
        %v526 = vand.u32 %v242, 4294901760
        %v527 = vsub.f32 %v242, %v526
        %528 = vmatpush1.msra.mxu0 %v527
        %529 = vmatprep.subr.mxu0 0.0
        %v530 = vand.u32 %v243, 4294901760
        %v531 = vsub.f32 %v243, %v530
        %532 = vmatpush1.msra.mxu0 %v531
        %533 = vmatprep.subr.mxu0 0.0
        %v534 = vand.u32 %v244, 4294901760
        %v535 = vsub.f32 %v244, %v534
        %536 = vmatpush1.msra.mxu0 %v535
        %537 = vmatprep.subr.mxu0 0.0
        %538 = vmatpush1.msra.mxu0 0.0
        %539 = vmatprep.subr.mxu0 0.0
        %540 = vmatpush1.msra.mxu0 0.0
        %541 = vmatprep.subr.mxu0 0.0
        %542 = vmatpush1.msra.mxu0 0.0
        %543 = vmatprep.subr.mxu0 0.0
        %544 = vmatpush1.msra.mxu0 0.0
        %545 = vmatprep.subr.mxu0 0.0
        %546 = vmatpush1.msra.mxu0 0.0
        %547 = vmatprep.subr.mxu0 0.0
        %548 = vmatpush1.msra.mxu0 0.0
        %549 = vmatprep.subr.mxu0 0.0
        %550 = vmatpush1.msra.mxu0 0.0
        %551 = vmatprep.subr.mxu0 0.0
        %552 = vmatpush1.msra.mxu0 0.0
        %553 = vmatprep.subr.mxu0 0.0
        %554 = vmatpush1.msra.mxu0 0.0
        %555 = vmatprep.subr.mxu0 0.0
        %556 = vmatpush1.msra.mxu0 0.0
        %557 = vmatprep.subr.mxu0 0.0
        %558 = vmatpush1.msra.mxu0 0.0
        %559 = vmatprep.subr.mxu0 0.0
        %560 = vmatpush1.msra.mxu0 0.0
        %561 = vmatprep.subr.mxu0 0.0
        %562 = vmatpush1.msra.mxu0 0.0
        %563 = vmatprep.subr.mxu0 0.0
        %564 = vmatpush1.msra.mxu0 0.0
        %565 = vmatprep.subr.mxu0 0.0
        %566 = vmatpush1.msra.mxu0 0.0
        %567 = vmatprep.subr.mxu0 0.0
        %568 = vmatpush1.msra.mxu0 0.0
        %569 = vmatprep.subr.mxu0 0.0
        %570 = vmatpush1.msra.mxu0 0.0
        %571 = vmatprep.subr.mxu0 0.0
        %572 = vmatpush1.msra.mxu0 0.0
        %573 = vmatprep.subr.mxu0 0.0
        %574 = vmatpush1.msra.mxu0 0.0
        %575 = vmatprep.subr.mxu0 0.0
        %576 = vmatpush1.msra.mxu0 0.0
        %577 = vmatprep.subr.mxu0 0.0
        %578 = vmatpush1.msra.mxu0 0.0
        %579 = vmatprep.subr.mxu0 0.0
        %580 = vmatpush1.msra.mxu0 0.0
        %581 = vmatprep.subr.mxu0 0.0
        %582 = vmatpush1.msra.mxu0 0.0
        %583 = vmatprep.subr.mxu0 0.0
        %584 = vmatpush1.msra.mxu0 0.0
        %585 = vmatprep.mubr.f32.mxu0 0.0
        %v586 = vand.u32 %v309, 4294901760
        %v587 = vsub.f32 %v309, %v586
        %588 = vmatmul.mubr.f32.gmra.mrb[0].mxu0 %v587
        %v589 = vpop.f32.mrb[0].mxu0
        %v590 = vadd.f32 %v502, %v589
        %v591 = vpop.f32.mrb[0].mxu0
        %592 = vdwg.mxu0
        %593 = vmatprep.subr.mxu0 0.0
        %v594 = vand.u32 %v237, 4294901760
        %595 = vmatpush1.msra.mxu0 %v594
        %596 = vmatprep.subr.mxu0 0.0
        %v597 = vand.u32 %v238, 4294901760
        %598 = vmatpush1.msra.mxu0 %v597
        %599 = vmatprep.subr.mxu0 0.0
        %v600 = vand.u32 %v239, 4294901760
        %601 = vmatpush1.msra.mxu0 %v600
        %602 = vmatprep.subr.mxu0 0.0
        %v603 = vand.u32 %v240, 4294901760
        %604 = vmatpush1.msra.mxu0 %v603
        %605 = vmatprep.subr.mxu0 0.0
        %v606 = vand.u32 %v241, 4294901760
        %607 = vmatpush1.msra.mxu0 %v606
        %608 = vmatprep.subr.mxu0 0.0
        %v609 = vand.u32 %v242, 4294901760
        %610 = vmatpush1.msra.mxu0 %v609
        %611 = vmatprep.subr.mxu0 0.0
        %v612 = vand.u32 %v243, 4294901760
        %613 = vmatpush1.msra.mxu0 %v612
        %614 = vmatprep.subr.mxu0 0.0
        %v615 = vand.u32 %v244, 4294901760
        %616 = vmatpush1.msra.mxu0 %v615
        %617 = vmatprep.subr.mxu0 0.0
        %618 = vmatpush1.msra.mxu0 0.0
        %619 = vmatprep.subr.mxu0 0.0
        %620 = vmatpush1.msra.mxu0 0.0
        %621 = vmatprep.subr.mxu0 0.0
        %622 = vmatpush1.msra.mxu0 0.0
        %623 = vmatprep.subr.mxu0 0.0
        %624 = vmatpush1.msra.mxu0 0.0
        %625 = vmatprep.subr.mxu0 0.0
        %626 = vmatpush1.msra.mxu0 0.0
        %627 = vmatprep.subr.mxu0 0.0
        %628 = vmatpush1.msra.mxu0 0.0
        %629 = vmatprep.subr.mxu0 0.0
        %630 = vmatpush1.msra.mxu0 0.0
        %631 = vmatprep.subr.mxu0 0.0
        %632 = vmatpush1.msra.mxu0 0.0
        %633 = vmatprep.subr.mxu0 0.0
        %634 = vmatpush1.msra.mxu0 0.0
        %635 = vmatprep.subr.mxu0 0.0
        %636 = vmatpush1.msra.mxu0 0.0
        %637 = vmatprep.subr.mxu0 0.0
        %638 = vmatpush1.msra.mxu0 0.0
        %639 = vmatprep.subr.mxu0 0.0
        %640 = vmatpush1.msra.mxu0 0.0
        %641 = vmatprep.subr.mxu0 0.0
        %642 = vmatpush1.msra.mxu0 0.0
        %643 = vmatprep.subr.mxu0 0.0
        %644 = vmatpush1.msra.mxu0 0.0
        %645 = vmatprep.subr.mxu0 0.0
        %646 = vmatpush1.msra.mxu0 0.0
        %647 = vmatprep.subr.mxu0 0.0
        %648 = vmatpush1.msra.mxu0 0.0
        %649 = vmatprep.subr.mxu0 0.0
        %650 = vmatpush1.msra.mxu0 0.0
        %651 = vmatprep.subr.mxu0 0.0
        %652 = vmatpush1.msra.mxu0 0.0
        %653 = vmatprep.subr.mxu0 0.0
        %654 = vmatpush1.msra.mxu0 0.0
        %655 = vmatprep.subr.mxu0 0.0
        %656 = vmatpush1.msra.mxu0 0.0
        %657 = vmatprep.subr.mxu0 0.0
        %658 = vmatpush1.msra.mxu0 0.0
        %659 = vmatprep.subr.mxu0 0.0
        %660 = vmatpush1.msra.mxu0 0.0
        %661 = vmatprep.subr.mxu0 0.0
        %662 = vmatpush1.msra.mxu0 0.0
        %663 = vmatprep.subr.mxu0 0.0
        %664 = vmatpush1.msra.mxu0 0.0
        %665 = vmatprep.mubr.f32.mxu0 0.0
        %v666 = vand.u32 %v309, 4294901760
        %v667 = vsub.f32 %v309, %v666
        %v668 = vand.u32 %v667, 4294901760
        %669 = vmatmul.mubr.f32.gmra.mrb[0].mxu0 %v668
        %v670 = vpop.f32.mrb[0].mxu0
        %v671 = vadd.f32 %v590, %v670
        %v672 = vpop.f32.mrb[0].mxu0
        %673 = vdwg.mxu0
        %674 = vmatprep.subr.mxu0 0.0
        %v675 = vand.u32 %v237, 4294901760
        %v676 = vsub.f32 %v237, %v675
        %v677 = vand.u32 %v676, 4294901760
        %678 = vmatpush1.msra.mxu0 %v677
        %679 = vmatprep.subr.mxu0 0.0
        %v680 = vand.u32 %v238, 4294901760
        %v681 = vsub.f32 %v238, %v680
        %v682 = vand.u32 %v681, 4294901760
        %683 = vmatpush1.msra.mxu0 %v682
        %684 = vmatprep.subr.mxu0 0.0
        %v685 = vand.u32 %v239, 4294901760
        %v686 = vsub.f32 %v239, %v685
        %v687 = vand.u32 %v686, 4294901760
        %688 = vmatpush1.msra.mxu0 %v687
        %689 = vmatprep.subr.mxu0 0.0
        %v690 = vand.u32 %v240, 4294901760
        %v691 = vsub.f32 %v240, %v690
        %v692 = vand.u32 %v691, 4294901760
        %693 = vmatpush1.msra.mxu0 %v692
        %694 = vmatprep.subr.mxu0 0.0
        %v695 = vand.u32 %v241, 4294901760
        %v696 = vsub.f32 %v241, %v695
        %v697 = vand.u32 %v696, 4294901760
        %698 = vmatpush1.msra.mxu0 %v697
        %699 = vmatprep.subr.mxu0 0.0
        %v700 = vand.u32 %v242, 4294901760
        %v701 = vsub.f32 %v242, %v700
        %v702 = vand.u32 %v701, 4294901760
        %703 = vmatpush1.msra.mxu0 %v702
        %704 = vmatprep.subr.mxu0 0.0
        %v705 = vand.u32 %v243, 4294901760
        %v706 = vsub.f32 %v243, %v705
        %v707 = vand.u32 %v706, 4294901760
        %708 = vmatpush1.msra.mxu0 %v707
        %709 = vmatprep.subr.mxu0 0.0
        %v710 = vand.u32 %v244, 4294901760
        %v711 = vsub.f32 %v244, %v710
        %v712 = vand.u32 %v711, 4294901760
        %713 = vmatpush1.msra.mxu0 %v712
        %714 = vmatprep.subr.mxu0 0.0
        %715 = vmatpush1.msra.mxu0 0.0
        %716 = vmatprep.subr.mxu0 0.0
        %717 = vmatpush1.msra.mxu0 0.0
        %718 = vmatprep.subr.mxu0 0.0
        %719 = vmatpush1.msra.mxu0 0.0
        %720 = vmatprep.subr.mxu0 0.0
        %721 = vmatpush1.msra.mxu0 0.0
        %722 = vmatprep.subr.mxu0 0.0
        %723 = vmatpush1.msra.mxu0 0.0
        %724 = vmatprep.subr.mxu0 0.0
        %725 = vmatpush1.msra.mxu0 0.0
        %726 = vmatprep.subr.mxu0 0.0
        %727 = vmatpush1.msra.mxu0 0.0
        %728 = vmatprep.subr.mxu0 0.0
        %729 = vmatpush1.msra.mxu0 0.0
        %730 = vmatprep.subr.mxu0 0.0
        %731 = vmatpush1.msra.mxu0 0.0
        %732 = vmatprep.subr.mxu0 0.0
        %733 = vmatpush1.msra.mxu0 0.0
        %734 = vmatprep.subr.mxu0 0.0
        %735 = vmatpush1.msra.mxu0 0.0
        %736 = vmatprep.subr.mxu0 0.0
        %737 = vmatpush1.msra.mxu0 0.0
        %738 = vmatprep.subr.mxu0 0.0
        %739 = vmatpush1.msra.mxu0 0.0
        %740 = vmatprep.subr.mxu0 0.0
        %741 = vmatpush1.msra.mxu0 0.0
        %742 = vmatprep.subr.mxu0 0.0
        %743 = vmatpush1.msra.mxu0 0.0
        %744 = vmatprep.subr.mxu0 0.0
        %745 = vmatpush1.msra.mxu0 0.0
        %746 = vmatprep.subr.mxu0 0.0
        %747 = vmatpush1.msra.mxu0 0.0
        %748 = vmatprep.subr.mxu0 0.0
        %749 = vmatpush1.msra.mxu0 0.0
        %750 = vmatprep.subr.mxu0 0.0
        %751 = vmatpush1.msra.mxu0 0.0
        %752 = vmatprep.subr.mxu0 0.0
        %753 = vmatpush1.msra.mxu0 0.0
        %754 = vmatprep.subr.mxu0 0.0
        %755 = vmatpush1.msra.mxu0 0.0
        %756 = vmatprep.subr.mxu0 0.0
        %757 = vmatpush1.msra.mxu0 0.0
        %758 = vmatprep.subr.mxu0 0.0
        %759 = vmatpush1.msra.mxu0 0.0
        %760 = vmatprep.subr.mxu0 0.0
        %761 = vmatpush1.msra.mxu0 0.0
        %762 = vmatprep.mubr.f32.mxu0 0.0
        %v763 = vand.u32 %v309, 4294901760
        %764 = vmatmul.mubr.f32.gmra.mrb[0].mxu0 %v763
        %v765 = vpop.f32.mrb[0].mxu0
        %v766 = vadd.f32 %v671, %v765
        %v767 = vpop.f32.mrb[0].mxu0
        %768 = vdwg.mxu0
        %769 = vmatprep.subr.mxu0 0.0
        %v770 = vand.u32 %v237, 4294901760
        %771 = vmatpush1.msra.mxu0 %v770
        %772 = vmatprep.subr.mxu0 0.0
        %v773 = vand.u32 %v238, 4294901760
        %774 = vmatpush1.msra.mxu0 %v773
        %775 = vmatprep.subr.mxu0 0.0
        %v776 = vand.u32 %v239, 4294901760
        %777 = vmatpush1.msra.mxu0 %v776
        %778 = vmatprep.subr.mxu0 0.0
        %v779 = vand.u32 %v240, 4294901760
        %780 = vmatpush1.msra.mxu0 %v779
        %781 = vmatprep.subr.mxu0 0.0
        %v782 = vand.u32 %v241, 4294901760
        %783 = vmatpush1.msra.mxu0 %v782
        %784 = vmatprep.subr.mxu0 0.0
        %v785 = vand.u32 %v242, 4294901760
        %786 = vmatpush1.msra.mxu0 %v785
        %787 = vmatprep.subr.mxu0 0.0
        %v788 = vand.u32 %v243, 4294901760
        %789 = vmatpush1.msra.mxu0 %v788
        %790 = vmatprep.subr.mxu0 0.0
        %v791 = vand.u32 %v244, 4294901760
        %792 = vmatpush1.msra.mxu0 %v791
        %793 = vmatprep.subr.mxu0 0.0
        %794 = vmatpush1.msra.mxu0 0.0
        %795 = vmatprep.subr.mxu0 0.0
        %796 = vmatpush1.msra.mxu0 0.0
        %797 = vmatprep.subr.mxu0 0.0
        %798 = vmatpush1.msra.mxu0 0.0
        %799 = vmatprep.subr.mxu0 0.0
        %800 = vmatpush1.msra.mxu0 0.0
        %801 = vmatprep.subr.mxu0 0.0
        %802 = vmatpush1.msra.mxu0 0.0
        %803 = vmatprep.subr.mxu0 0.0
        %804 = vmatpush1.msra.mxu0 0.0
        %805 = vmatprep.subr.mxu0 0.0
        %806 = vmatpush1.msra.mxu0 0.0
        %807 = vmatprep.subr.mxu0 0.0
        %808 = vmatpush1.msra.mxu0 0.0
        %809 = vmatprep.subr.mxu0 0.0
        %810 = vmatpush1.msra.mxu0 0.0
        %811 = vmatprep.subr.mxu0 0.0
        %812 = vmatpush1.msra.mxu0 0.0
        %813 = vmatprep.subr.mxu0 0.0
        %814 = vmatpush1.msra.mxu0 0.0
        %815 = vmatprep.subr.mxu0 0.0
        %816 = vmatpush1.msra.mxu0 0.0
        %817 = vmatprep.subr.mxu0 0.0
        %818 = vmatpush1.msra.mxu0 0.0
        %819 = vmatprep.subr.mxu0 0.0
        %820 = vmatpush1.msra.mxu0 0.0
        %821 = vmatprep.subr.mxu0 0.0
        %822 = vmatpush1.msra.mxu0 0.0
        %823 = vmatprep.subr.mxu0 0.0
        %824 = vmatpush1.msra.mxu0 0.0
        %825 = vmatprep.subr.mxu0 0.0
        %826 = vmatpush1.msra.mxu0 0.0
        %827 = vmatprep.subr.mxu0 0.0
        %828 = vmatpush1.msra.mxu0 0.0
        %829 = vmatprep.subr.mxu0 0.0
        %830 = vmatpush1.msra.mxu0 0.0
        %831 = vmatprep.subr.mxu0 0.0
        %832 = vmatpush1.msra.mxu0 0.0
        %833 = vmatprep.subr.mxu0 0.0
        %834 = vmatpush1.msra.mxu0 0.0
        %835 = vmatprep.subr.mxu0 0.0
        %836 = vmatpush1.msra.mxu0 0.0
        %837 = vmatprep.subr.mxu0 0.0
        %838 = vmatpush1.msra.mxu0 0.0
        %839 = vmatprep.subr.mxu0 0.0
        %840 = vmatpush1.msra.mxu0 0.0
        %841 = vmatprep.mubr.f32.mxu0 0.0
        %v842 = vand.u32 %v309, 4294901760
        %843 = vmatmul.mubr.f32.gmra.mrb[0].mxu0 %v842
        %v844 = vpop.f32.mrb[0].mxu0
        %v845 = vadd.f32 %v766, %v844
        %v846 = vpop.f32.mrb[0].mxu0
        %847 = vdwg.mxu0
        %v848 = vmax.f32 %v845, 0.0
        %v849 = vld [vmem:[%s2] sm:$0xf]
        %vm850 = vcmask 31744
        %v852 = vsel %vm850, %v848, 0
        %vm854 = vcmask 1043456
        %v856 = vsel %vm854, %v849, 0
        %858 = vmatprep.subr.mxu0 0.0
        %v859 = vand.u32 %v856, 4294901760
        %860 = vmatpush1.msra.mxu0 %v859
        %861 = vmatprep.subr.mxu0 0.0
        %862 = vmatpush1.msra.mxu0 0.0
        %863 = vmatprep.subr.mxu0 0.0
        %864 = vmatpush1.msra.mxu0 0.0
        %865 = vmatprep.subr.mxu0 0.0
        %866 = vmatpush1.msra.mxu0 0.0
        %867 = vmatprep.subr.mxu0 0.0
        %868 = vmatpush1.msra.mxu0 0.0
        %869 = vmatprep.subr.mxu0 0.0
        %870 = vmatpush1.msra.mxu0 0.0
        %871 = vmatprep.subr.mxu0 0.0
        %872 = vmatpush1.msra.mxu0 0.0
        %873 = vmatprep.subr.mxu0 0.0
        %874 = vmatpush1.msra.mxu0 0.0
        %875 = vmatprep.subr.mxu0 0.0
        %876 = vmatpush1.msra.mxu0 0.0
        %877 = vmatprep.subr.mxu0 0.0
        %878 = vmatpush1.msra.mxu0 0.0
        %879 = vmatprep.subr.mxu0 0.0
        %880 = vmatpush1.msra.mxu0 0.0
        %881 = vmatprep.subr.mxu0 0.0
        %882 = vmatpush1.msra.mxu0 0.0
        %883 = vmatprep.subr.mxu0 0.0
        %884 = vmatpush1.msra.mxu0 0.0
        %885 = vmatprep.subr.mxu0 0.0
        %886 = vmatpush1.msra.mxu0 0.0
        %887 = vmatprep.subr.mxu0 0.0
        %888 = vmatpush1.msra.mxu0 0.0
        %889 = vmatprep.subr.mxu0 0.0
        %890 = vmatpush1.msra.mxu0 0.0
        %891 = vmatprep.subr.mxu0 0.0
        %892 = vmatpush1.msra.mxu0 0.0
        %893 = vmatprep.subr.mxu0 0.0
        %894 = vmatpush1.msra.mxu0 0.0
        %895 = vmatprep.subr.mxu0 0.0
        %896 = vmatpush1.msra.mxu0 0.0
        %897 = vmatprep.subr.mxu0 0.0
        %898 = vmatpush1.msra.mxu0 0.0
        %899 = vmatprep.subr.mxu0 0.0
        %900 = vmatpush1.msra.mxu0 0.0
        %901 = vmatprep.subr.mxu0 0.0
        %902 = vmatpush1.msra.mxu0 0.0
        %903 = vmatprep.subr.mxu0 0.0
        %904 = vmatpush1.msra.mxu0 0.0
        %905 = vmatprep.subr.mxu0 0.0
        %906 = vmatpush1.msra.mxu0 0.0
        %907 = vmatprep.subr.mxu0 0.0
        %908 = vmatpush1.msra.mxu0 0.0
        %909 = vmatprep.subr.mxu0 0.0
        %910 = vmatpush1.msra.mxu0 0.0
        %911 = vmatprep.subr.mxu0 0.0
        %912 = vmatpush1.msra.mxu0 0.0
        %913 = vmatprep.subr.mxu0 0.0
        %914 = vmatpush1.msra.mxu0 0.0
        %915 = vmatprep.subr.mxu0 0.0
        %916 = vmatpush1.msra.mxu0 0.0
        %917 = vmatprep.subr.mxu0 0.0
        %918 = vmatpush1.msra.mxu0 0.0
        %919 = vmatprep.subr.mxu0 0.0
        %920 = vmatpush1.msra.mxu0 0.0
        %921 = vmatprep.subr.mxu0 0.0
        %922 = vmatpush1.msra.mxu0 0.0
        %923 = vmatprep.mubr.f32.mxu0 0.0
        %v924 = vand.u32 %v852, 4294901760
        %v925 = vsub.f32 %v852, %v924
        %v926 = vand.u32 %v925, 4294901760
        %v927 = vsub.f32 %v925, %v926
        %v928 = vand.u32 %v927, 4294901760
        %929 = vmatmul.mubr.f32.gmra.mrb[0].mxu0 %v928
        %v930 = vpop.f32.mrb[0].mxu0
        %v931 = vadd.f32 0.0, %v930
        %v932 = vpop.f32.mrb[0].mxu0
        %933 = vdwg.mxu0
        %934 = vmatprep.subr.mxu0 0.0
        %v935 = vand.u32 %v856, 4294901760
        %v936 = vsub.f32 %v856, %v935
        %v937 = vand.u32 %v936, 4294901760
        %v938 = vsub.f32 %v936, %v937
        %v939 = vand.u32 %v938, 4294901760
        %940 = vmatpush1.msra.mxu0 %v939
        %941 = vmatprep.subr.mxu0 0.0
        %942 = vmatpush1.msra.mxu0 0.0
        %943 = vmatprep.subr.mxu0 0.0
        %944 = vmatpush1.msra.mxu0 0.0
        %945 = vmatprep.subr.mxu0 0.0
        %946 = vmatpush1.msra.mxu0 0.0
        %947 = vmatprep.subr.mxu0 0.0
        %948 = vmatpush1.msra.mxu0 0.0
        %949 = vmatprep.subr.mxu0 0.0
        %950 = vmatpush1.msra.mxu0 0.0
        %951 = vmatprep.subr.mxu0 0.0
        %952 = vmatpush1.msra.mxu0 0.0
        %953 = vmatprep.subr.mxu0 0.0
        %954 = vmatpush1.msra.mxu0 0.0
        %955 = vmatprep.subr.mxu0 0.0
        %956 = vmatpush1.msra.mxu0 0.0
        %957 = vmatprep.subr.mxu0 0.0
        %958 = vmatpush1.msra.mxu0 0.0
        %959 = vmatprep.subr.mxu0 0.0
        %960 = vmatpush1.msra.mxu0 0.0
        %961 = vmatprep.subr.mxu0 0.0
        %962 = vmatpush1.msra.mxu0 0.0
        %963 = vmatprep.subr.mxu0 0.0
        %964 = vmatpush1.msra.mxu0 0.0
        %965 = vmatprep.subr.mxu0 0.0
        %966 = vmatpush1.msra.mxu0 0.0
        %967 = vmatprep.subr.mxu0 0.0
        %968 = vmatpush1.msra.mxu0 0.0
        %969 = vmatprep.subr.mxu0 0.0
        %970 = vmatpush1.msra.mxu0 0.0
        %971 = vmatprep.subr.mxu0 0.0
        %972 = vmatpush1.msra.mxu0 0.0
        %973 = vmatprep.subr.mxu0 0.0
        %974 = vmatpush1.msra.mxu0 0.0
        %975 = vmatprep.subr.mxu0 0.0
        %976 = vmatpush1.msra.mxu0 0.0
        %977 = vmatprep.subr.mxu0 0.0
        %978 = vmatpush1.msra.mxu0 0.0
        %979 = vmatprep.subr.mxu0 0.0
        %980 = vmatpush1.msra.mxu0 0.0
        %981 = vmatprep.subr.mxu0 0.0
        %982 = vmatpush1.msra.mxu0 0.0
        %983 = vmatprep.subr.mxu0 0.0
        %984 = vmatpush1.msra.mxu0 0.0
        %985 = vmatprep.subr.mxu0 0.0
        %986 = vmatpush1.msra.mxu0 0.0
        %987 = vmatprep.subr.mxu0 0.0
        %988 = vmatpush1.msra.mxu0 0.0
        %989 = vmatprep.subr.mxu0 0.0
        %990 = vmatpush1.msra.mxu0 0.0
        %991 = vmatprep.subr.mxu0 0.0
        %992 = vmatpush1.msra.mxu0 0.0
        %993 = vmatprep.subr.mxu0 0.0
        %994 = vmatpush1.msra.mxu0 0.0
        %995 = vmatprep.subr.mxu0 0.0
        %996 = vmatpush1.msra.mxu0 0.0
        %997 = vmatprep.subr.mxu0 0.0
        %998 = vmatpush1.msra.mxu0 0.0
        %999 = vmatprep.subr.mxu0 0.0
        %1000 = vmatpush1.msra.mxu0 0.0
        %1001 = vmatprep.subr.mxu0 0.0
        %1002 = vmatpush1.msra.mxu0 0.0
        %1003 = vmatprep.mubr.f32.mxu0 0.0
        %v1004 = vand.u32 %v852, 4294901760
        %1005 = vmatmul.mubr.f32.gmra.mrb[0].mxu0 %v1004
        %v1006 = vpop.f32.mrb[0].mxu0
        %v1007 = vadd.f32 %v931, %v1006
        %v1008 = vpop.f32.mrb[0].mxu0
        %1009 = vdwg.mxu0
        %1010 = vmatprep.subr.mxu0 0.0
        %v1011 = vand.u32 %v856, 4294901760
        %v1012 = vsub.f32 %v856, %v1011
        %1013 = vmatpush1.msra.mxu0 %v1012
        %1014 = vmatprep.subr.mxu0 0.0
        %1015 = vmatpush1.msra.mxu0 0.0
        %1016 = vmatprep.subr.mxu0 0.0
        %1017 = vmatpush1.msra.mxu0 0.0
        %1018 = vmatprep.subr.mxu0 0.0
        %1019 = vmatpush1.msra.mxu0 0.0
        %1020 = vmatprep.subr.mxu0 0.0
        %1021 = vmatpush1.msra.mxu0 0.0
        %1022 = vmatprep.subr.mxu0 0.0
        %1023 = vmatpush1.msra.mxu0 0.0
        %1024 = vmatprep.subr.mxu0 0.0
        %1025 = vmatpush1.msra.mxu0 0.0
        %1026 = vmatprep.subr.mxu0 0.0
        %1027 = vmatpush1.msra.mxu0 0.0
        %1028 = vmatprep.subr.mxu0 0.0
        %1029 = vmatpush1.msra.mxu0 0.0
        %1030 = vmatprep.subr.mxu0 0.0
        %1031 = vmatpush1.msra.mxu0 0.0
        %1032 = vmatprep.subr.mxu0 0.0
        %1033 = vmatpush1.msra.mxu0 0.0
        %1034 = vmatprep.subr.mxu0 0.0
        %1035 = vmatpush1.msra.mxu0 0.0
        %1036 = vmatprep.subr.mxu0 0.0
        %1037 = vmatpush1.msra.mxu0 0.0
        %1038 = vmatprep.subr.mxu0 0.0
        %1039 = vmatpush1.msra.mxu0 0.0
        %1040 = vmatprep.subr.mxu0 0.0
        %1041 = vmatpush1.msra.mxu0 0.0
        %1042 = vmatprep.subr.mxu0 0.0
        %1043 = vmatpush1.msra.mxu0 0.0
        %1044 = vmatprep.subr.mxu0 0.0
        %1045 = vmatpush1.msra.mxu0 0.0
        %1046 = vmatprep.subr.mxu0 0.0
        %1047 = vmatpush1.msra.mxu0 0.0
        %1048 = vmatprep.subr.mxu0 0.0
        %1049 = vmatpush1.msra.mxu0 0.0
        %1050 = vmatprep.subr.mxu0 0.0
        %1051 = vmatpush1.msra.mxu0 0.0
        %1052 = vmatprep.subr.mxu0 0.0
        %1053 = vmatpush1.msra.mxu0 0.0
        %1054 = vmatprep.subr.mxu0 0.0
        %1055 = vmatpush1.msra.mxu0 0.0
        %1056 = vmatprep.subr.mxu0 0.0
        %1057 = vmatpush1.msra.mxu0 0.0
        %1058 = vmatprep.subr.mxu0 0.0
        %1059 = vmatpush1.msra.mxu0 0.0
        %1060 = vmatprep.subr.mxu0 0.0
        %1061 = vmatpush1.msra.mxu0 0.0
        %1062 = vmatprep.subr.mxu0 0.0
        %1063 = vmatpush1.msra.mxu0 0.0
        %1064 = vmatprep.subr.mxu0 0.0
        %1065 = vmatpush1.msra.mxu0 0.0
        %1066 = vmatprep.subr.mxu0 0.0
        %1067 = vmatpush1.msra.mxu0 0.0
        %1068 = vmatprep.subr.mxu0 0.0
        %1069 = vmatpush1.msra.mxu0 0.0
        %1070 = vmatprep.subr.mxu0 0.0
        %1071 = vmatpush1.msra.mxu0 0.0
        %1072 = vmatprep.subr.mxu0 0.0
        %1073 = vmatpush1.msra.mxu0 0.0
        %1074 = vmatprep.subr.mxu0 0.0
        %1075 = vmatpush1.msra.mxu0 0.0
        %1076 = vmatprep.mubr.f32.mxu0 0.0
        %v1077 = vand.u32 %v852, 4294901760
        %v1078 = vsub.f32 %v852, %v1077
        %1079 = vmatmul.mubr.f32.gmra.mrb[0].mxu0 %v1078
        %v1080 = vpop.f32.mrb[0].mxu0
        %v1081 = vadd.f32 %v1007, %v1080
        %v1082 = vpop.f32.mrb[0].mxu0
        %1083 = vdwg.mxu0
        %1084 = vmatprep.subr.mxu0 0.0
        %v1085 = vand.u32 %v856, 4294901760
        %1086 = vmatpush1.msra.mxu0 %v1085
        %1087 = vmatprep.subr.mxu0 0.0
        %1088 = vmatpush1.msra.mxu0 0.0
        %1089 = vmatprep.subr.mxu0 0.0
        %1090 = vmatpush1.msra.mxu0 0.0
        %1091 = vmatprep.subr.mxu0 0.0
        %1092 = vmatpush1.msra.mxu0 0.0
        %1093 = vmatprep.subr.mxu0 0.0
        %1094 = vmatpush1.msra.mxu0 0.0
        %1095 = vmatprep.subr.mxu0 0.0
        %1096 = vmatpush1.msra.mxu0 0.0
        %1097 = vmatprep.subr.mxu0 0.0
        %1098 = vmatpush1.msra.mxu0 0.0
        %1099 = vmatprep.subr.mxu0 0.0
        %1100 = vmatpush1.msra.mxu0 0.0
        %1101 = vmatprep.subr.mxu0 0.0
        %1102 = vmatpush1.msra.mxu0 0.0
        %1103 = vmatprep.subr.mxu0 0.0
        %1104 = vmatpush1.msra.mxu0 0.0
        %1105 = vmatprep.subr.mxu0 0.0
        %1106 = vmatpush1.msra.mxu0 0.0
        %1107 = vmatprep.subr.mxu0 0.0
        %1108 = vmatpush1.msra.mxu0 0.0
        %1109 = vmatprep.subr.mxu0 0.0
        %1110 = vmatpush1.msra.mxu0 0.0
        %1111 = vmatprep.subr.mxu0 0.0
        %1112 = vmatpush1.msra.mxu0 0.0
        %1113 = vmatprep.subr.mxu0 0.0
        %1114 = vmatpush1.msra.mxu0 0.0
        %1115 = vmatprep.subr.mxu0 0.0
        %1116 = vmatpush1.msra.mxu0 0.0
        %1117 = vmatprep.subr.mxu0 0.0
        %1118 = vmatpush1.msra.mxu0 0.0
        %1119 = vmatprep.subr.mxu0 0.0
        %1120 = vmatpush1.msra.mxu0 0.0
        %1121 = vmatprep.subr.mxu0 0.0
        %1122 = vmatpush1.msra.mxu0 0.0
        %1123 = vmatprep.subr.mxu0 0.0
        %1124 = vmatpush1.msra.mxu0 0.0
        %1125 = vmatprep.subr.mxu0 0.0
        %1126 = vmatpush1.msra.mxu0 0.0
        %1127 = vmatprep.subr.mxu0 0.0
        %1128 = vmatpush1.msra.mxu0 0.0
        %1129 = vmatprep.subr.mxu0 0.0
        %1130 = vmatpush1.msra.mxu0 0.0
        %1131 = vmatprep.subr.mxu0 0.0
        %1132 = vmatpush1.msra.mxu0 0.0
        %1133 = vmatprep.subr.mxu0 0.0
        %1134 = vmatpush1.msra.mxu0 0.0
        %1135 = vmatprep.subr.mxu0 0.0
        %1136 = vmatpush1.msra.mxu0 0.0
        %1137 = vmatprep.subr.mxu0 0.0
        %1138 = vmatpush1.msra.mxu0 0.0
        %1139 = vmatprep.subr.mxu0 0.0
        %1140 = vmatpush1.msra.mxu0 0.0
        %1141 = vmatprep.subr.mxu0 0.0
        %1142 = vmatpush1.msra.mxu0 0.0
        %1143 = vmatprep.subr.mxu0 0.0
        %1144 = vmatpush1.msra.mxu0 0.0
        %1145 = vmatprep.subr.mxu0 0.0
        %1146 = vmatpush1.msra.mxu0 0.0
        %1147 = vmatprep.subr.mxu0 0.0
        %1148 = vmatpush1.msra.mxu0 0.0
        %1149 = vmatprep.mubr.f32.mxu0 0.0
        %v1150 = vand.u32 %v852, 4294901760
        %v1151 = vsub.f32 %v852, %v1150
        %v1152 = vand.u32 %v1151, 4294901760
        %1153 = vmatmul.mubr.f32.gmra.mrb[0].mxu0 %v1152
        %v1154 = vpop.f32.mrb[0].mxu0
        %v1155 = vadd.f32 %v1081, %v1154
        %v1156 = vpop.f32.mrb[0].mxu0
        %1157 = vdwg.mxu0
        %1158 = vmatprep.subr.mxu0 0.0
        %v1159 = vand.u32 %v856, 4294901760
        %v1160 = vsub.f32 %v856, %v1159
        %v1161 = vand.u32 %v1160, 4294901760
        %1162 = vmatpush1.msra.mxu0 %v1161
        %1163 = vmatprep.subr.mxu0 0.0
        %1164 = vmatpush1.msra.mxu0 0.0
        %1165 = vmatprep.subr.mxu0 0.0
        %1166 = vmatpush1.msra.mxu0 0.0
        %1167 = vmatprep.subr.mxu0 0.0
        %1168 = vmatpush1.msra.mxu0 0.0
        %1169 = vmatprep.subr.mxu0 0.0
        %1170 = vmatpush1.msra.mxu0 0.0
        %1171 = vmatprep.subr.mxu0 0.0
        %1172 = vmatpush1.msra.mxu0 0.0
        %1173 = vmatprep.subr.mxu0 0.0
        %1174 = vmatpush1.msra.mxu0 0.0
        %1175 = vmatprep.subr.mxu0 0.0
        %1176 = vmatpush1.msra.mxu0 0.0
        %1177 = vmatprep.subr.mxu0 0.0
        %1178 = vmatpush1.msra.mxu0 0.0
        %1179 = vmatprep.subr.mxu0 0.0
        %1180 = vmatpush1.msra.mxu0 0.0
        %1181 = vmatprep.subr.mxu0 0.0
        %1182 = vmatpush1.msra.mxu0 0.0
        %1183 = vmatprep.subr.mxu0 0.0
        %1184 = vmatpush1.msra.mxu0 0.0
        %1185 = vmatprep.subr.mxu0 0.0
        %1186 = vmatpush1.msra.mxu0 0.0
        %1187 = vmatprep.subr.mxu0 0.0
        %1188 = vmatpush1.msra.mxu0 0.0
        %1189 = vmatprep.subr.mxu0 0.0
        %1190 = vmatpush1.msra.mxu0 0.0
        %1191 = vmatprep.subr.mxu0 0.0
        %1192 = vmatpush1.msra.mxu0 0.0
        %1193 = vmatprep.subr.mxu0 0.0
        %1194 = vmatpush1.msra.mxu0 0.0
        %1195 = vmatprep.subr.mxu0 0.0
        %1196 = vmatpush1.msra.mxu0 0.0
        %1197 = vmatprep.subr.mxu0 0.0
        %1198 = vmatpush1.msra.mxu0 0.0
        %1199 = vmatprep.subr.mxu0 0.0
        %1200 = vmatpush1.msra.mxu0 0.0
        %1201 = vmatprep.subr.mxu0 0.0
        %1202 = vmatpush1.msra.mxu0 0.0
        %1203 = vmatprep.subr.mxu0 0.0
        %1204 = vmatpush1.msra.mxu0 0.0
        %1205 = vmatprep.subr.mxu0 0.0
        %1206 = vmatpush1.msra.mxu0 0.0
        %1207 = vmatprep.subr.mxu0 0.0
        %1208 = vmatpush1.msra.mxu0 0.0
        %1209 = vmatprep.subr.mxu0 0.0
        %1210 = vmatpush1.msra.mxu0 0.0
        %1211 = vmatprep.subr.mxu0 0.0
        %1212 = vmatpush1.msra.mxu0 0.0
        %1213 = vmatprep.subr.mxu0 0.0
        %1214 = vmatpush1.msra.mxu0 0.0
        %1215 = vmatprep.subr.mxu0 0.0
        %1216 = vmatpush1.msra.mxu0 0.0
        %1217 = vmatprep.subr.mxu0 0.0
        %1218 = vmatpush1.msra.mxu0 0.0
        %1219 = vmatprep.subr.mxu0 0.0
        %1220 = vmatpush1.msra.mxu0 0.0
        %1221 = vmatprep.subr.mxu0 0.0
        %1222 = vmatpush1.msra.mxu0 0.0
        %1223 = vmatprep.subr.mxu0 0.0
        %1224 = vmatpush1.msra.mxu0 0.0
        %1225 = vmatprep.mubr.f32.mxu0 0.0
        %v1226 = vand.u32 %v852, 4294901760
        %1227 = vmatmul.mubr.f32.gmra.mrb[0].mxu0 %v1226
        %v1228 = vpop.f32.mrb[0].mxu0
        %v1229 = vadd.f32 %v1155, %v1228
        %v1230 = vpop.f32.mrb[0].mxu0
        %1231 = vdwg.mxu0
        %1232 = vmatprep.subr.mxu0 0.0
        %v1233 = vand.u32 %v856, 4294901760
        %1234 = vmatpush1.msra.mxu0 %v1233
        %1235 = vmatprep.subr.mxu0 0.0
        %1236 = vmatpush1.msra.mxu0 0.0
        %1237 = vmatprep.subr.mxu0 0.0
        %1238 = vmatpush1.msra.mxu0 0.0
        %1239 = vmatprep.subr.mxu0 0.0
        %1240 = vmatpush1.msra.mxu0 0.0
        %1241 = vmatprep.subr.mxu0 0.0
        %1242 = vmatpush1.msra.mxu0 0.0
        %1243 = vmatprep.subr.mxu0 0.0
        %1244 = vmatpush1.msra.mxu0 0.0
        %1245 = vmatprep.subr.mxu0 0.0
        %1246 = vmatpush1.msra.mxu0 0.0
        %1247 = vmatprep.subr.mxu0 0.0
        %1248 = vmatpush1.msra.mxu0 0.0
        %1249 = vmatprep.subr.mxu0 0.0
        %1250 = vmatpush1.msra.mxu0 0.0
        %1251 = vmatprep.subr.mxu0 0.0
        %1252 = vmatpush1.msra.mxu0 0.0
        %1253 = vmatprep.subr.mxu0 0.0
        %1254 = vmatpush1.msra.mxu0 0.0
        %1255 = vmatprep.subr.mxu0 0.0
        %1256 = vmatpush1.msra.mxu0 0.0
        %1257 = vmatprep.subr.mxu0 0.0
        %1258 = vmatpush1.msra.mxu0 0.0
        %1259 = vmatprep.subr.mxu0 0.0
        %1260 = vmatpush1.msra.mxu0 0.0
        %1261 = vmatprep.subr.mxu0 0.0
        %1262 = vmatpush1.msra.mxu0 0.0
        %1263 = vmatprep.subr.mxu0 0.0
        %1264 = vmatpush1.msra.mxu0 0.0
        %1265 = vmatprep.subr.mxu0 0.0
        %1266 = vmatpush1.msra.mxu0 0.0
        %1267 = vmatprep.subr.mxu0 0.0
        %1268 = vmatpush1.msra.mxu0 0.0
        %1269 = vmatprep.subr.mxu0 0.0
        %1270 = vmatpush1.msra.mxu0 0.0
        %1271 = vmatprep.subr.mxu0 0.0
        %1272 = vmatpush1.msra.mxu0 0.0
        %1273 = vmatprep.subr.mxu0 0.0
        %1274 = vmatpush1.msra.mxu0 0.0
        %1275 = vmatprep.subr.mxu0 0.0
        %1276 = vmatpush1.msra.mxu0 0.0
        %1277 = vmatprep.subr.mxu0 0.0
        %1278 = vmatpush1.msra.mxu0 0.0
        %1279 = vmatprep.subr.mxu0 0.0
        %1280 = vmatpush1.msra.mxu0 0.0
        %1281 = vmatprep.subr.mxu0 0.0
        %1282 = vmatpush1.msra.mxu0 0.0
        %1283 = vmatprep.subr.mxu0 0.0
        %1284 = vmatpush1.msra.mxu0 0.0
        %1285 = vmatprep.subr.mxu0 0.0
        %1286 = vmatpush1.msra.mxu0 0.0
        %1287 = vmatprep.subr.mxu0 0.0
        %1288 = vmatpush1.msra.mxu0 0.0
        %1289 = vmatprep.subr.mxu0 0.0
        %1290 = vmatpush1.msra.mxu0 0.0
        %1291 = vmatprep.subr.mxu0 0.0
        %1292 = vmatpush1.msra.mxu0 0.0
        %1293 = vmatprep.subr.mxu0 0.0
        %1294 = vmatpush1.msra.mxu0 0.0
        %1295 = vmatprep.subr.mxu0 0.0
        %1296 = vmatpush1.msra.mxu0 0.0
        %1297 = vmatprep.mubr.f32.mxu0 0.0
        %v1298 = vand.u32 %v852, 4294901760
        %1299 = vmatmul.mubr.f32.gmra.mrb[0].mxu0 %v1298
        %v1300 = vpop.f32.mrb[0].mxu0
        %v1301 = vadd.f32 %v1229, %v1300
        %v1302 = vpop.f32.mrb[0].mxu0
        %1303 = vdwg.mxu0
        %v1304 = vxor.u32 %v1301, 2147483648
        %v1305 = vmul.f32 %v1304, 1.442695
        %v1306 = vpow.pop %v1305
        %v1307 = vadd.f32 %v1306, 1.0
        %v1308 = vrcp.pop %v1307
        %v1309 = vmul.f32 1.0, %v1308
        %v1310 = vlaneseq
        %v1311 = vshrl.u32 %v1310, 7
        %v1312 = vsub.s32 0, %v1311
        %v1313 = vrot.slane %v1309, %v1312
        %1315 = vbcast.lane.b32.xlu0 %v1313, 256
        %v1316 = vpop.permute.xlu0 %1315
        %s1318 = sor.u32 256, 8
        %1319 = vbcast.lane.b32.xlu0 %v1313, %s1318
        %v1320 = vpop.permute.xlu0 %1319
        %s1322 = sor.u32 256, 16
        %1323 = vbcast.lane.b32.xlu0 %v1313, %s1322
        %v1324 = vpop.permute.xlu0 %1323
        %s1326 = sor.u32 256, 24
        %1327 = vbcast.lane.b32.xlu0 %v1313, %s1326
        %v1328 = vpop.permute.xlu0 %1327
        %s1330 = sor.u32 256, 32
        %1331 = vbcast.lane.b32.xlu0 %v1313, %s1330
        %v1332 = vpop.permute.xlu0 %1331
        %s1334 = sor.u32 256, 40
        %1335 = vbcast.lane.b32.xlu0 %v1313, %s1334
        %v1336 = vpop.permute.xlu0 %1335
        %s1338 = sor.u32 256, 48
        %1339 = vbcast.lane.b32.xlu0 %v1313, %s1338
        %v1340 = vpop.permute.xlu0 %1339
        %s1342 = sor.u32 256, 56
        %1343 = vbcast.lane.b32.xlu0 %v1313, %s1342
        %v1344 = vpop.permute.xlu0 %1343
        %v1345 = vmul.f32 %v189, %v1316
        %v1346 = vmul.f32 %v190, %v1316
        %v1347 = vmul.f32 %v191, %v1320
        %v1348 = vmul.f32 %v192, %v1320
        %v1349 = vmul.f32 %v193, %v1324
        %v1350 = vmul.f32 %v194, %v1324
        %v1351 = vmul.f32 %v195, %v1328
        %v1352 = vmul.f32 %v196, %v1328
        %v1353 = vmul.f32 %v197, %v1332
        %v1354 = vmul.f32 %v198, %v1332
        %v1355 = vmul.f32 %v199, %v1336
        %v1356 = vmul.f32 %v200, %v1336
        %v1357 = vmul.f32 %v201, %v1340
        %v1358 = vmul.f32 %v202, %v1340
        %v1359 = vmul.f32 %v203, %v1344
        %v1360 = vmul.f32 %v204, %v1344
        %1361 = vst [vmem:[%s188] sm:$0xff] %v1345
        %1362 = vst [vmem:[%s188 + $0x8] sm:$0xff] %v1346
        %1363 = vst [vmem:[%s188 + $0x10] sm:$0xff] %v1347
        %1364 = vst [vmem:[%s188 + $0x18] sm:$0xff] %v1348
        %1365 = vst [vmem:[%s188 + $0x20] sm:$0xff] %v1349
        %1366 = vst [vmem:[%s188 + $0x28] sm:$0xff] %v1350
        %1367 = vst [vmem:[%s188 + $0x30] sm:$0xff] %v1351
        %1368 = vst [vmem:[%s188 + $0x38] sm:$0xff] %v1352
        %1369 = vst [vmem:[%s188 + $0x40] sm:$0xff] %v1353
        %1370 = vst [vmem:[%s188 + $0x48] sm:$0xff] %v1354
        %1371 = vst [vmem:[%s188 + $0x50] sm:$0xff] %v1355
        %1372 = vst [vmem:[%s188 + $0x58] sm:$0xff] %v1356
        %1373 = vst [vmem:[%s188 + $0x60] sm:$0xff] %v1357
        %1374 = vst [vmem:[%s188 + $0x68] sm:$0xff] %v1358
        %1375 = vst [vmem:[%s188 + $0x70] sm:$0xff] %v1359
        %1376 = vst [vmem:[%s188 + $0x78] sm:$0xff] %v1360
        %s1377 = sand.u32 %s96, 1
        %s1378 = scalar_lea.sflag [#allocation4], %s1377
        %s1379 = sand.u32 %s96, 1
        %s1380 = smul.addr %s1379, 128
        %s1381 = scalar_lea.vmem [#allocation5], %s1380
        // Predicated region
        $region37: #{tpu_custom_call.1} parent=31 // pred_check
          %p1382 = pneg %p106
        $region38: #{tpu_custom_call.1} parent=31 // pred_check_branch
          %1384 = sbr.rel (%p1382) target = $region40
        $region39: #{tpu_custom_call.1} parent=31 // pred_region
          %s1386 = ssub.s32 2048, 2048
          %1387 = vsyncadd %s1378, %s1386
          %s1388 = smul.addr %s20, 16
          %s1389 = smul.addr %s1388, 128
          %s1390 = scalar_lea.hbm %s3, %s1389
          %s1391 = sshll.u32 %s1381, 4
          %s1392 = int_to_ptr.vmem [resolvable:$true] %s1391
          %1397 = dma.vmem_to_hbm [thread:$0]  %s1392, 2048, %s1390, %s1378, 256, 256, 16
        $region40: #{tpu_custom_call.1} parent=31 // pred_fallthru
          _
      $region32: #{tpu_custom_call.1} parent=5 // pred_fallthru
        _
      %p1398 = scmp.le.s32.totalorder 2, %s15
      // Predicated region
      $region41: #{tpu_custom_call.1} parent=5 // pred_check
        %p1399 = pneg %p1398
      $region42: #{tpu_custom_call.1} parent=5 // pred_check_branch
        %1401 = sbr.rel (%p1399) target = $region44
      $region43: #{tpu_custom_call.1} parent=5 // pred_region
        %s1402 = ssub.s32 %s15, 2
        // Predicated region
        $region45: #{tpu_custom_call.1} parent=43 // pred_check
          %p1403 = pneg %p112
        $region46: #{tpu_custom_call.1} parent=43 // pred_check_branch
          %1405 = sbr.rel (%p1403) target = $region48
        $region47: #{tpu_custom_call.1} parent=43 // pred_region
          %s1406 = sand.u32 %s97, 1
          %s1407 = scalar_lea.sflag [#allocation4], %s1406
          %s1408 = sand.u32 %s97, 1
          %s1409 = smul.addr %s1408, 128
          %s1410 = scalar_lea.vmem [#allocation5], %s1409
          %1411 = dma.done %s1407, 2048
        $region48: #{tpu_custom_call.1} parent=43 // pred_fallthru
          _
      $region44: #{tpu_custom_call.1} parent=5 // pred_fallthru
        _
    $region6: #{tpu_custom_call.1} parent=1 // loop_footer
      %s19 = sadd.s32 1, %s15
    $region7: #{tpu_custom_call.1} parent=1 // loop_footer_branch
      %14 = sbr.rel target = $region3
    $region8: #{tpu_custom_call.1} parent=1 // loop_exit
      _
    %1412 = vsyncpa [#allocation3], 1
    %s1413 = scalar_lea.sflag [#allocation3], 1
    %1414 = vsyncpa %s1413, 1
    %1415 = vsyncpa [#allocation4], 1
    %s1416 = scalar_lea.sflag [#allocation4], 1
    %1417 = vsyncpa %s1416, 1

</llo_original>
